<compile_context>
chip_gen: v7x
topology: tpu7x:2x2x1
jax: 0.10.0
libtpu: 0.0.40
codegen_flags: <defaults>
</compile_context>

<pallas_src>
import functools

import jax
import jax.numpy as jnp
from jax.experimental import pallas as pl
from jax.experimental.pallas import tpu as pltpu

NEG_SLOPE = 0.01        # nn.LeakyReLU default inside BasicFullyConnectedNet
INV_LRELU_ALPHA = 0.95  # InvLeakyRelu(alpha=0.95)
LANE = 128
SUBLANE = 8


def _round_up(x, m):
    return ((x + m - 1) // m) * m


def _flow_block_kernel(x_ref, an_s_ref, an_l_ref,
                       w_in_ref, b_in_ref, w_h_ref, b_h_ref,
                       w_out_s_ref, b_out_s_ref, w_out_t_ref, b_out_t_ref,
                       p0_ref, p1_ref,
                       y_ref, ld_ref, *, dp, depth, an_ld):
    """ActNorm -> InvLeakyRelu -> double coupling -> Shuffle on one batch tile.

    x layout: padded split layout [half0 (lanes 0:D of slot 0) | half1 (lanes
    0:D of slot dp)], dp a multiple of 128; padded lanes are zero / identity so
    they perturb neither the result nor the logdet.
    """
    f32 = jnp.float32
    mm = w_in_ref.dtype                               # bf16 (fast) or f32 (exact)
    x = x_ref[...].astype(f32)                        # (TB, 2*dp)

    # --- ActNorm: h = scale * (x + loc); its logdet (H=W=1) is the host-
    # precomputed constant `an_ld`. ---
    h = an_s_ref[...] * (x + an_l_ref[...])

    # --- InvLeakyRelu(alpha=0.95); forward logdet contribution is 0 ---
    h = jnp.where(h >= 0, h, INV_LRELU_ALPHA * h)

    # --- DoubleVectorCouplingBlock (reverse=False), packed fused s/t nets ---
    def fused_net(step, inp):
        # inp: (TB, dp) f32. One block-diagonal MLP runs the s-net (hidden lanes
        # [0:H]) and the t-net (lanes [H:2H]) side by side. Only the dot inputs
        # are cast to `mm`; accumulation and elementwise math stay f32.
        a = jnp.dot(inp.astype(mm), w_in_ref[step],
                    preferred_element_type=f32) + b_in_ref[step]
        a = jnp.where(a > 0, a, NEG_SLOPE * a)
        for d in range(depth):            # small static depth -> unrolled
            a = jnp.dot(a.astype(mm), w_h_ref[step, d],
                        preferred_element_type=f32) + b_h_ref[step, d]
            a = jnp.where(a > 0, a, NEG_SLOPE * a)
        a = a.astype(mm)
        # Split output heads keep scale/shift lane-aligned with the kept half
        # (no cross-lane roll / iota mask needed).
        scale = jnp.tanh(jnp.dot(a, w_out_s_ref[step],
                                 preferred_element_type=f32) + b_out_s_ref[step])
        shift = jnp.dot(a, w_out_t_ref[step],
                        preferred_element_type=f32) + b_out_t_ref[step]
        return scale, shift

    xa = h[:, :dp]                       # tile-aligned views, no relayout
    xb = h[:, dp:]

    s0, t0 = fused_net(0, xa)            # step 0: transform second half
    xb_new = xb * jnp.exp(s0) + t0
    s1, t1 = fused_net(1, xb_new)        # step 1 (after swap): transform first half
    xa_new = xa * jnp.exp(s1) + t1

    # --- Shuffle + un-pad folded in: 0/1 permutation matrices select post-
    # coupling channel perm[col] into output lane col (kept in f32 so the final
    # values are not re-rounded). Coupling output order is [xb_new | xa_new]. ---
    y = (jnp.dot(xb_new, p0_ref[...], preferred_element_type=f32)
         + jnp.dot(xa_new, p1_ref[...], preferred_element_type=f32))
    y_ref[...] = y.astype(y_ref.dtype)

    logdet = (jnp.sum(s0, axis=1, keepdims=True)
              + jnp.sum(s1, axis=1, keepdims=True) + an_ld)        # (TB, 1)
    # Lane-dense logdet store (avoid width-1 masked vst); column 0 is consumed.
    ld_ref[...] = jnp.broadcast_to(logdet, ld_ref.shape).astype(ld_ref.dtype)


def init_raw_params(key, in_channels, hidden_dim, hidden_depth):
    """Deterministic synthetic parameters mirroring the PyTorch module layout.

    Coupling-MLP stacking convention: 0=s[0], 1=s[1], 2=t[0], 3=t[1];
    weight matrices are stored (in_features, out_features).
    """
    C = in_channels
    D = C // 2
    ks = jax.random.split(key, 9)
    sc = 0.1
    return dict(
        win=sc * jax.random.normal(ks[0], (4, D, hidden_dim), jnp.float32),
        bin=sc * jax.random.normal(ks[1], (4, 1, hidden_dim), jnp.float32),
        wh=sc * jax.random.normal(
            ks[2], (4, hidden_depth, hidden_dim, hidden_dim), jnp.float32),
        bh=sc * jax.random.normal(
            ks[3], (4, hidden_depth, 1, hidden_dim), jnp.float32),
        wout=sc * jax.random.normal(ks[4], (4, hidden_dim, D), jnp.float32),
        bout=sc * jax.random.normal(ks[5], (4, 1, D), jnp.float32),
        an_loc=sc * jax.random.normal(ks[6], (C,), jnp.float32),
        an_scale=jnp.exp(sc * jax.random.normal(ks[7], (C,), jnp.float32)),
        perm=jax.random.permutation(ks[8], C),
    )


def prepare_kernel_params(raw, in_channels, hidden_dim, hidden_depth,
                          matmul_dtype=jnp.bfloat16):
    """One-time restack of the per-net parameters into the fused/packed layout.

    * s/t nets of each coupling step are merged into one block-diagonal MLP of
      hidden width Hf = round_up(2*H, 128) (s lanes [0:H], t lanes [H:2H]).
    * The final layer is kept as two (Hf, Dp) heads (scale / shift), both
      lane-aligned with the kept half.
    * Matmul weights are stored in `matmul_dtype` (bf16 by default); biases,
      ActNorm params and the 0/1 shuffle matrices stay f32.
    """
    C, D, H, depth = in_channels, in_channels // 2, hidden_dim, hidden_depth
    Dp = _round_up(D, LANE)
    Hf = _round_up(2 * H, LANE)
    Cp = _round_up(C, LANE)

    w_in = jnp.zeros((2, Dp, Hf), jnp.float32)
    b_in = jnp.zeros((2, 1, Hf), jnp.float32)
    w_h = jnp.zeros((2, depth, Hf, Hf), jnp.float32)
    b_h = jnp.zeros((2, depth, 1, Hf), jnp.float32)
    w_out_s = jnp.zeros((2, Hf, Dp), jnp.float32)
    b_out_s = jnp.zeros((2, 1, Dp), jnp.float32)
    w_out_t = jnp.zeros((2, Hf, Dp), jnp.float32)
    b_out_t = jnp.zeros((2, 1, Dp), jnp.float32)

    for step in range(2):
        si, ti = step, 2 + step      # raw stacking: 0,1 = s[0],s[1]; 2,3 = t[0],t[1]
        w_in = w_in.at[step, :D, :H].set(raw['win'][si])
        w_in = w_in.at[step, :D, H:2 * H].set(raw['win'][ti])
        b_in = b_in.at[step, :, :H].set(raw['bin'][si])
        b_in = b_in.at[step, :, H:2 * H].set(raw['bin'][ti])
        for d in range(depth):
            w_h = w_h.at[step, d, :H, :H].set(raw['wh'][si, d])
            w_h = w_h.at[step, d, H:2 * H, H:2 * H].set(raw['wh'][ti, d])
            b_h = b_h.at[step, d, :, :H].set(raw['bh'][si, d])
            b_h = b_h.at[step, d, :, H:2 * H].set(raw['bh'][ti, d])
        w_out_s = w_out_s.at[step, :H, :D].set(raw['wout'][si])
        b_out_s = b_out_s.at[step, :, :D].set(raw['bout'][si])
        w_out_t = w_out_t.at[step, H:2 * H, :D].set(raw['wout'][ti])
        b_out_t = b_out_t.at[step, :, :D].set(raw['bout'][ti])

    # ActNorm params in the padded split layout; padded lanes: scale=1, loc=0.
    an_s = jnp.ones((1, 2 * Dp), jnp.float32)
    an_s = an_s.at[0, :D].set(raw['an_scale'][:D]).at[0, Dp:Dp + D].set(raw['an_scale'][D:])
    an_l = jnp.zeros((1, 2 * Dp), jnp.float32)
    an_l = an_l.at[0, :D].set(raw['an_loc'][:D]).at[0, Dp:Dp + D].set(raw['an_loc'][D:])
    # ActNorm logdet scalar (H=W=1) precomputed once on the host.
    an_ld = float(jnp.sum(jnp.log(jnp.abs(raw['an_scale']))))

    # Shuffle folded into the kernel: 0/1 matrices selecting post-coupling
    # channel perm[col] (coupling output order is [xb_new | xa_new]) into output
    # lane col; they also perform the un-pad reordering. logdet contribution 0.
    onehot = (raw['perm'][None, :] == jnp.arange(C)[:, None]).astype(jnp.float32)
    onehot = jnp.pad(onehot, ((0, 0), (0, Cp - C)))              # (C, Cp)
    p0 = jnp.zeros((Dp, Cp), jnp.float32).at[:D].set(onehot[:D])
    p1 = jnp.zeros((Dp, Cp), jnp.float32).at[:D].set(onehot[D:])

    mm = matmul_dtype
    return dict(an_s=an_s, an_l=an_l,
                w_in=w_in.astype(mm), b_in=b_in,
                w_h=w_h.astype(mm), b_h=b_h,
                w_out_s=w_out_s.astype(mm), b_out_s=b_out_s,
                w_out_t=w_out_t.astype(mm), b_out_t=b_out_t,
                p0=p0, p1=p1, an_ld=an_ld,
                C=C, D=D, Dp=Dp, Hf=Hf, Cp=Cp, depth=depth)


def flow_block_forward(x_nchw, kp, *, batch_tile=256):
    """x_nchw: (B, C, 1, 1) float32. Returns (h (B, C, 1, 1), logdet (B,))."""
    B, C, Hh, Ww = x_nchw.shape
    assert Hh == 1 and Ww == 1, "module expects trailing spatial dims of size 1"
    assert C == kp['C'] and C % 2 == 0
    D, Dp, Cp, Hf, depth = kp['D'], kp['Dp'], kp['Cp'], kp['Hf'], kp['depth']

    x2d = x_nchw.reshape(B, C).astype(jnp.float32)

    # Batch tiling: multiples of 8 sublanes; force >= 2 (parallel) grid tiles
    # whenever B allows so both v7x TensorCores get work.
    n_tiles = max(2, pl.cdiv(B, batch_tile)) if B > SUBLANE else 1
    TB = _round_up(pl.cdiv(B, n_tiles), SUBLANE)
    Bp = _round_up(B, TB)

    # Single-pad host prologue into the [half0 | half1] 128-aligned layout.
    x_pad = jnp.pad(x2d.reshape(B, 2, D),
                    ((0, Bp - B), (0, 0), (0, Dp - D))).reshape(Bp, 2 * Dp)

    kernel = functools.partial(_flow_block_kernel, dp=Dp, depth=depth,
                               an_ld=kp['an_ld'])

    weight_names = ('an_s', 'an_l', 'w_in', 'b_in', 'w_h', 'b_h',
                    'w_out_s', 'b_out_s', 'w_out_t', 'b_out_t', 'p0', 'p1')
    weights = [kp[n] for n in weight_names]

    def _const_spec(a):
        nd = a.ndim
        # Constant block index -> the full weight stays VMEM-resident.
        return pl.BlockSpec(a.shape, lambda i, nd=nd: (0,) * nd)

    in_specs = ([pl.BlockSpec((TB, 2 * Dp), lambda i: (i, 0))]
                + [_const_spec(w) for w in weights])
    out_specs = (pl.BlockSpec((TB, Cp), lambda i: (i, 0)),
                 pl.BlockSpec((TB, LANE), lambda i: (i, 0)))
    out_shape = (jax.ShapeDtypeStruct((Bp, Cp), jnp.float32),
                 jax.ShapeDtypeStruct((Bp, LANE), jnp.float32))

    # VMEM budget: (double-buffered) resident weights + x/y/logdet tiles +
    # activation headroom, clamped to the device's physical VMEM capacity
    # (64 MiB/TC on v7x, 128 MiB on v5e/v6e).
    param_bytes = sum(int(w.size) * w.dtype.itemsize for w in weights)
    tile_bytes = 2 * TB * (2 * Dp + Cp + LANE) * 4
    act_bytes = 8 * TB * max(2 * Dp, Hf, Cp) * 4
    budget = 2 * param_bytes + tile_bytes + act_bytes + (4 << 20)
    try:
        cap = int(getattr(pltpu.get_tpu_info(), 'vmem_capacity_bytes', 64 << 20))
    except Exception:
        cap = 64 << 20
    vmem_limit = int(max(16 << 20, min(cap - (8 << 20), budget)))

    y_pad, ld_pad = pl.pallas_call(
        kernel,
        grid=(Bp // TB,),
        in_specs=in_specs,
        out_specs=out_specs,
        out_shape=out_shape,
        compiler_params=pltpu.CompilerParams(
            dimension_semantics=("parallel",),   # shards batch tiles across TCs
            vmem_limit_bytes=vmem_limit),
    )(x_pad, *weights)

    # Shuffle already applied in-kernel; epilogue is a plain slice.
    y2d = y_pad[:B, :C]
    logdet = ld_pad[:B, 0]
    return y2d.reshape(B, C, 1, 1), logdet


def reference_forward(x_nchw, raw, hidden_depth):
    """Pure-JAX reference mirroring the PyTorch forward (reverse=False):
    ActNorm -> InvLeakyRelu(0.95) -> DoubleVectorCouplingBlock -> Shuffle."""
    B, C = x_nchw.shape[0], x_nchw.shape[1]
    x = x_nchw.reshape(B, C).astype(jnp.float32)
    D = C // 2

    h = raw['an_scale'][None, :] * (x + raw['an_loc'][None, :])
    logdet = jnp.full((B,), jnp.sum(jnp.log(jnp.abs(raw['an_scale']))), jnp.float32)

    h = jnp.where(h >= 0, h, INV_LRELU_ALPHA * h)

    def run_net(idx, inp, use_tanh):
        a = inp @ raw['win'][idx] + raw['bin'][idx]
        a = jnp.where(a > 0, a, NEG_SLOPE * a)
        for d in range(hidden_depth):
            a = a @ raw['wh'][idx, d] + raw['bh'][idx, d]
            a = jnp.where(a > 0, a, NEG_SLOPE * a)
        out = a @ raw['wout'][idx] + raw['bout'][idx]
        return jnp.tanh(out) if use_tanh else out

    for i in range(2):
        if i % 2 != 0:
            h = jnp.concatenate([h[:, D:], h[:, :D]], axis=1)
        xa, xb = h[:, :D], h[:, D:]
        scale = run_net(i, xa, True)
        shift = run_net(2 + i, xa, False)
        h = jnp.concatenate([xa, xb * jnp.exp(scale) + shift], axis=1)
        logdet = logdet + jnp.sum(scale, axis=1)

    h = h[:, raw['perm']]   # Shuffle
    return h.reshape(B, C, 1, 1), logdet


if __name__ == "__main__":
    B, C = 2, 4
    hidden_dim, hidden_depth = 32, 2

    key = jax.random.PRNGKey(0)
    k_x, k_p = jax.random.split(key)
    x = jax.random.normal(k_x, (B, C, 1, 1), jnp.float32)

    raw = init_raw_params(k_p, C, hidden_dim, hidden_depth)
    y_ref, ld_ref = reference_forward(x, raw, hidden_depth)

    # 1) f32-weight run: strict check of the packed fusion / shuffle-matmul wiring.
    kp32 = prepare_kernel_params(raw, C, hidden_dim, hidden_depth,
                                 matmul_dtype=jnp.float32)
    y32, ld32 = flow_block_forward(x, kp32)
    jax.block_until_ready((y32, ld32))
    assert jnp.allclose(y32, y_ref, atol=1e-3, rtol=1e-3), \
        float(jnp.max(jnp.abs(y32 - y_ref)))
    assert jnp.allclose(ld32, ld_ref, atol=1e-3, rtol=1e-3), \
        float(jnp.max(jnp.abs(ld32 - ld_ref)))

    # 2) bf16 fast path (default): bf16 MXU inputs, f32 accumulation/elementwise.
    #    Looser tolerance only reflects bf16 operand rounding.
    kp16 = prepare_kernel_params(raw, C, hidden_dim, hidden_depth,
                                 matmul_dtype=jnp.bfloat16)
    y16, ld16 = flow_block_forward(x, kp16)
    jax.block_until_ready((y16, ld16))
    assert jnp.allclose(y16, y_ref, atol=3e-2, rtol=3e-2), \
        float(jnp.max(jnp.abs(y16 - y_ref)))
    assert jnp.allclose(ld16, ld_ref, atol=3e-2, rtol=3e-2), \
        float(jnp.max(jnp.abs(ld16 - ld_ref)))

    print("KERNEL_OK")
</pallas_src>

<mosaic_0001>
module attributes {stable_mosaic.version = 11 : i64} {
  func.func @_flow_block_kernel(%arg0: i32, %arg1: memref<8x256xf32, #tpu.memory_space<vmem>>, %arg2: memref<1x256xf32, #tpu.memory_space<vmem>>, %arg3: memref<1x256xf32, #tpu.memory_space<vmem>>, %arg4: memref<2x128x128xf32, #tpu.memory_space<vmem>>, %arg5: memref<2x1x128xf32, #tpu.memory_space<vmem>>, %arg6: memref<2x2x128x128xf32, #tpu.memory_space<vmem>>, %arg7: memref<2x2x1x128xf32, #tpu.memory_space<vmem>>, %arg8: memref<2x128x128xf32, #tpu.memory_space<vmem>>, %arg9: memref<2x1x128xf32, #tpu.memory_space<vmem>>, %arg10: memref<2x128x128xf32, #tpu.memory_space<vmem>>, %arg11: memref<2x1x128xf32, #tpu.memory_space<vmem>>, %arg12: memref<128x128xf32, #tpu.memory_space<vmem>>, %arg13: memref<128x128xf32, #tpu.memory_space<vmem>>, %arg14: memref<8x128xf32, #tpu.memory_space<vmem>>, %arg15: memref<8x128xf32, #tpu.memory_space<vmem>>) attributes {dimension_semantics = [#tpu.dimension_semantics<parallel>], iteration_bounds = array<i64: 1>, scalar_prefetch = 0 : i64, scratch_operands = 0 : i64, tpu.core_type = #tpu.core_type<tc>, window_params = [{transform_indices = @transform_0, window_bounds = array<i64: 8, 256>}, {pipeline_mode = #tpu.pipeline_mode<synchronous>, transform_indices = @transform_1, window_bounds = array<i64: 1, 256>}, {pipeline_mode = #tpu.pipeline_mode<synchronous>, transform_indices = @transform_2, window_bounds = array<i64: 1, 256>}, {pipeline_mode = #tpu.pipeline_mode<synchronous>, transform_indices = @transform_3, window_bounds = array<i64: 2, 128, 128>}, {pipeline_mode = #tpu.pipeline_mode<synchronous>, transform_indices = @transform_4, window_bounds = array<i64: 2, 1, 128>}, {pipeline_mode = #tpu.pipeline_mode<synchronous>, transform_indices = @transform_5, window_bounds = array<i64: 2, 2, 128, 128>}, {pipeline_mode = #tpu.pipeline_mode<synchronous>, transform_indices = @transform_6, window_bounds = array<i64: 2, 2, 1, 128>}, {pipeline_mode = #tpu.pipeline_mode<synchronous>, transform_indices = @transform_7, window_bounds = array<i64: 2, 128, 128>}, {pipeline_mode = #tpu.pipeline_mode<synchronous>, transform_indices = @transform_8, window_bounds = array<i64: 2, 1, 128>}, {pipeline_mode = #tpu.pipeline_mode<synchronous>, transform_indices = @transform_9, window_bounds = array<i64: 2, 128, 128>}, {pipeline_mode = #tpu.pipeline_mode<synchronous>, transform_indices = @transform_10, window_bounds = array<i64: 2, 1, 128>}, {pipeline_mode = #tpu.pipeline_mode<synchronous>, transform_indices = @transform_11, window_bounds = array<i64: 128, 128>}, {pipeline_mode = #tpu.pipeline_mode<synchronous>, transform_indices = @transform_12, window_bounds = array<i64: 128, 128>}, {transform_indices = @transform_13, window_bounds = array<i64: 8, 128>}, {transform_indices = @transform_14, window_bounds = array<i64: 8, 128>}]} {
    %c0 = arith.constant 0 : index
    %c0_0 = arith.constant 0 : index
    %0 = vector.load %arg1[%c0, %c0_0] : memref<8x256xf32, #tpu.memory_space<vmem>>, vector<8x256xf32>
    %c0_1 = arith.constant 0 : index
    %c0_2 = arith.constant 0 : index
    %1 = vector.load %arg2[%c0_1, %c0_2] : memref<1x256xf32, #tpu.memory_space<vmem>>, vector<1x256xf32>
    %c0_3 = arith.constant 0 : index
    %c0_4 = arith.constant 0 : index
    %2 = vector.load %arg3[%c0_3, %c0_4] : memref<1x256xf32, #tpu.memory_space<vmem>>, vector<1x256xf32>
    %3 = vector.broadcast %2 : vector<1x256xf32> to vector<8x256xf32>
    %4 = arith.addf %0, %3 : vector<8x256xf32>
    %5 = vector.broadcast %1 : vector<1x256xf32> to vector<8x256xf32>
    %6 = arith.mulf %5, %4 : vector<8x256xf32>
    %cst = arith.constant 0.000000e+00 : f32
    %7 = vector.broadcast %cst : f32 to vector<8x256xf32>
    %8 = arith.cmpf oge, %6, %7 : vector<8x256xf32>
    %cst_5 = arith.constant 0.949999988 : f32
    %9 = vector.broadcast %cst_5 : f32 to vector<8x256xf32>
    %10 = arith.mulf %9, %6 : vector<8x256xf32>
    %11 = arith.select %8, %6, %10 : vector<8x256xi1>, vector<8x256xf32>
    %12 = vector.extract_strided_slice %11 {offsets = [0, 0], sizes = [8, 128], strides = [1, 1]} : vector<8x256xf32> to vector<8x128xf32>
    %13 = vector.extract_strided_slice %11 {offsets = [0, 128], sizes = [8, 128], strides = [1, 1]} : vector<8x256xf32> to vector<8x128xf32>
    %c0_6 = arith.constant 0 : index
    %c0_7 = arith.constant 0 : index
    %c0_8 = arith.constant 0 : index
    %14 = vector.load %arg4[%c0_6, %c0_7, %c0_8] : memref<2x128x128xf32, #tpu.memory_space<vmem>>, vector<1x128x128xf32>
    %15 = vector.shape_cast %14 : vector<1x128x128xf32> to vector<128x128xf32>
    %cst_9 = arith.constant dense<0.000000e+00> : vector<8x128xf32>
    %16 = tpu.matmul %12, %15, %cst_9 {dimension_numbers = #tpu.dot_dimension_numbers<[1], [0], [0], [1], [0, 0, 1, 1], [], []>} : vector<8x128xf32>, vector<128x128xf32>, vector<8x128xf32> -> vector<8x128xf32>
    %c0_10 = arith.constant 0 : index
    %c0_11 = arith.constant 0 : index
    %c0_12 = arith.constant 0 : index
    %17 = vector.load %arg5[%c0_10, %c0_11, %c0_12] : memref<2x1x128xf32, #tpu.memory_space<vmem>>, vector<1x1x128xf32>
    %18 = vector.shape_cast %17 : vector<1x1x128xf32> to vector<1x128xf32>
    %19 = vector.broadcast %18 : vector<1x128xf32> to vector<8x128xf32>
    %20 = arith.addf %16, %19 : vector<8x128xf32>
    %cst_13 = arith.constant 0.000000e+00 : f32
    %21 = vector.broadcast %cst_13 : f32 to vector<8x128xf32>
    %22 = arith.cmpf ogt, %20, %21 : vector<8x128xf32>
    %cst_14 = arith.constant 0.00999999977 : f32
    %23 = vector.broadcast %cst_14 : f32 to vector<8x128xf32>
    %24 = arith.mulf %23, %20 : vector<8x128xf32>
    %25 = arith.select %22, %20, %24 : vector<8x128xi1>, vector<8x128xf32>
    %c0_15 = arith.constant 0 : index
    %c0_16 = arith.constant 0 : index
    %c0_17 = arith.constant 0 : index
    %c0_18 = arith.constant 0 : index
    %26 = vector.load %arg6[%c0_15, %c0_16, %c0_17, %c0_18] : memref<2x2x128x128xf32, #tpu.memory_space<vmem>>, vector<1x1x128x128xf32>
    %27 = vector.shape_cast %26 : vector<1x1x128x128xf32> to vector<128x128xf32>
    %cst_19 = arith.constant dense<0.000000e+00> : vector<8x128xf32>
    %28 = tpu.matmul %25, %27, %cst_19 {dimension_numbers = #tpu.dot_dimension_numbers<[1], [0], [0], [1], [0, 0, 1, 1], [], []>} : vector<8x128xf32>, vector<128x128xf32>, vector<8x128xf32> -> vector<8x128xf32>
    %c0_20 = arith.constant 0 : index
    %c0_21 = arith.constant 0 : index
    %c0_22 = arith.constant 0 : index
    %c0_23 = arith.constant 0 : index
    %29 = vector.load %arg7[%c0_20, %c0_21, %c0_22, %c0_23] : memref<2x2x1x128xf32, #tpu.memory_space<vmem>>, vector<1x1x1x128xf32>
    %30 = vector.shape_cast %29 : vector<1x1x1x128xf32> to vector<1x128xf32>
    %31 = vector.broadcast %30 : vector<1x128xf32> to vector<8x128xf32>
    %32 = arith.addf %28, %31 : vector<8x128xf32>
    %cst_24 = arith.constant 0.000000e+00 : f32
    %33 = vector.broadcast %cst_24 : f32 to vector<8x128xf32>
    %34 = arith.cmpf ogt, %32, %33 : vector<8x128xf32>
    %cst_25 = arith.constant 0.00999999977 : f32
    %35 = vector.broadcast %cst_25 : f32 to vector<8x128xf32>
    %36 = arith.mulf %35, %32 : vector<8x128xf32>
    %37 = arith.select %34, %32, %36 : vector<8x128xi1>, vector<8x128xf32>
    %c0_26 = arith.constant 0 : index
    %c1 = arith.constant 1 : index
    %c0_27 = arith.constant 0 : index
    %c0_28 = arith.constant 0 : index
    %38 = vector.load %arg6[%c0_26, %c1, %c0_27, %c0_28] : memref<2x2x128x128xf32, #tpu.memory_space<vmem>>, vector<1x1x128x128xf32>
    %39 = vector.shape_cast %38 : vector<1x1x128x128xf32> to vector<128x128xf32>
    %cst_29 = arith.constant dense<0.000000e+00> : vector<8x128xf32>
    %40 = tpu.matmul %37, %39, %cst_29 {dimension_numbers = #tpu.dot_dimension_numbers<[1], [0], [0], [1], [0, 0, 1, 1], [], []>} : vector<8x128xf32>, vector<128x128xf32>, vector<8x128xf32> -> vector<8x128xf32>
    %c0_30 = arith.constant 0 : index
    %c1_31 = arith.constant 1 : index
    %c0_32 = arith.constant 0 : index
    %c0_33 = arith.constant 0 : index
    %41 = vector.load %arg7[%c0_30, %c1_31, %c0_32, %c0_33] : memref<2x2x1x128xf32, #tpu.memory_space<vmem>>, vector<1x1x1x128xf32>
    %42 = vector.shape_cast %41 : vector<1x1x1x128xf32> to vector<1x128xf32>
    %43 = vector.broadcast %42 : vector<1x128xf32> to vector<8x128xf32>
    %44 = arith.addf %40, %43 : vector<8x128xf32>
    %cst_34 = arith.constant 0.000000e+00 : f32
    %45 = vector.broadcast %cst_34 : f32 to vector<8x128xf32>
    %46 = arith.cmpf ogt, %44, %45 : vector<8x128xf32>
    %cst_35 = arith.constant 0.00999999977 : f32
    %47 = vector.broadcast %cst_35 : f32 to vector<8x128xf32>
    %48 = arith.mulf %47, %44 : vector<8x128xf32>
    %49 = arith.select %46, %44, %48 : vector<8x128xi1>, vector<8x128xf32>
    %c0_36 = arith.constant 0 : index
    %c0_37 = arith.constant 0 : index
    %c0_38 = arith.constant 0 : index
    %50 = vector.load %arg8[%c0_36, %c0_37, %c0_38] : memref<2x128x128xf32, #tpu.memory_space<vmem>>, vector<1x128x128xf32>
    %51 = vector.shape_cast %50 : vector<1x128x128xf32> to vector<128x128xf32>
    %cst_39 = arith.constant dense<0.000000e+00> : vector<8x128xf32>
    %52 = tpu.matmul %49, %51, %cst_39 {dimension_numbers = #tpu.dot_dimension_numbers<[1], [0], [0], [1], [0, 0, 1, 1], [], []>} : vector<8x128xf32>, vector<128x128xf32>, vector<8x128xf32> -> vector<8x128xf32>
    %c0_40 = arith.constant 0 : index
    %c0_41 = arith.constant 0 : index
    %c0_42 = arith.constant 0 : index
    %53 = vector.load %arg9[%c0_40, %c0_41, %c0_42] : memref<2x1x128xf32, #tpu.memory_space<vmem>>, vector<1x1x128xf32>
    %54 = vector.shape_cast %53 : vector<1x1x128xf32> to vector<1x128xf32>
    %55 = vector.broadcast %54 : vector<1x128xf32> to vector<8x128xf32>
    %56 = arith.addf %52, %55 : vector<8x128xf32>
    %57 = math.tanh %56 : vector<8x128xf32>
    %c0_43 = arith.constant 0 : index
    %c0_44 = arith.constant 0 : index
    %c0_45 = arith.constant 0 : index
    %58 = vector.load %arg10[%c0_43, %c0_44, %c0_45] : memref<2x128x128xf32, #tpu.memory_space<vmem>>, vector<1x128x128xf32>
    %59 = vector.shape_cast %58 : vector<1x128x128xf32> to vector<128x128xf32>
    %cst_46 = arith.constant dense<0.000000e+00> : vector<8x128xf32>
    %60 = tpu.matmul %49, %59, %cst_46 {dimension_numbers = #tpu.dot_dimension_numbers<[1], [0], [0], [1], [0, 0, 1, 1], [], []>} : vector<8x128xf32>, vector<128x128xf32>, vector<8x128xf32> -> vector<8x128xf32>
    %c0_47 = arith.constant 0 : index
    %c0_48 = arith.constant 0 : index
    %c0_49 = arith.constant 0 : index
    %61 = vector.load %arg11[%c0_47, %c0_48, %c0_49] : memref<2x1x128xf32, #tpu.memory_space<vmem>>, vector<1x1x128xf32>
    %62 = vector.shape_cast %61 : vector<1x1x128xf32> to vector<1x128xf32>
    %63 = vector.broadcast %62 : vector<1x128xf32> to vector<8x128xf32>
    %64 = arith.addf %60, %63 : vector<8x128xf32>
    %65 = math.exp %57 : vector<8x128xf32>
    %66 = arith.mulf %13, %65 : vector<8x128xf32>
    %67 = arith.addf %66, %64 : vector<8x128xf32>
    %c1_50 = arith.constant 1 : index
    %c0_51 = arith.constant 0 : index
    %c0_52 = arith.constant 0 : index
    %68 = vector.load %arg4[%c1_50, %c0_51, %c0_52] : memref<2x128x128xf32, #tpu.memory_space<vmem>>, vector<1x128x128xf32>
    %69 = vector.shape_cast %68 : vector<1x128x128xf32> to vector<128x128xf32>
    %cst_53 = arith.constant dense<0.000000e+00> : vector<8x128xf32>
    %70 = tpu.matmul %67, %69, %cst_53 {dimension_numbers = #tpu.dot_dimension_numbers<[1], [0], [0], [1], [0, 0, 1, 1], [], []>} : vector<8x128xf32>, vector<128x128xf32>, vector<8x128xf32> -> vector<8x128xf32>
    %c1_54 = arith.constant 1 : index
    %c0_55 = arith.constant 0 : index
    %c0_56 = arith.constant 0 : index
    %71 = vector.load %arg5[%c1_54, %c0_55, %c0_56] : memref<2x1x128xf32, #tpu.memory_space<vmem>>, vector<1x1x128xf32>
    %72 = vector.shape_cast %71 : vector<1x1x128xf32> to vector<1x128xf32>
    %73 = vector.broadcast %72 : vector<1x128xf32> to vector<8x128xf32>
    %74 = arith.addf %70, %73 : vector<8x128xf32>
    %cst_57 = arith.constant 0.000000e+00 : f32
    %75 = vector.broadcast %cst_57 : f32 to vector<8x128xf32>
    %76 = arith.cmpf ogt, %74, %75 : vector<8x128xf32>
    %cst_58 = arith.constant 0.00999999977 : f32
    %77 = vector.broadcast %cst_58 : f32 to vector<8x128xf32>
    %78 = arith.mulf %77, %74 : vector<8x128xf32>
    %79 = arith.select %76, %74, %78 : vector<8x128xi1>, vector<8x128xf32>
    %c1_59 = arith.constant 1 : index
    %c0_60 = arith.constant 0 : index
    %c0_61 = arith.constant 0 : index
    %c0_62 = arith.constant 0 : index
    %80 = vector.load %arg6[%c1_59, %c0_60, %c0_61, %c0_62] : memref<2x2x128x128xf32, #tpu.memory_space<vmem>>, vector<1x1x128x128xf32>
    %81 = vector.shape_cast %80 : vector<1x1x128x128xf32> to vector<128x128xf32>
    %cst_63 = arith.constant dense<0.000000e+00> : vector<8x128xf32>
    %82 = tpu.matmul %79, %81, %cst_63 {dimension_numbers = #tpu.dot_dimension_numbers<[1], [0], [0], [1], [0, 0, 1, 1], [], []>} : vector<8x128xf32>, vector<128x128xf32>, vector<8x128xf32> -> vector<8x128xf32>
    %c1_64 = arith.constant 1 : index
    %c0_65 = arith.constant 0 : index
    %c0_66 = arith.constant 0 : index
    %c0_67 = arith.constant 0 : index
    %83 = vector.load %arg7[%c1_64, %c0_65, %c0_66, %c0_67] : memref<2x2x1x128xf32, #tpu.memory_space<vmem>>, vector<1x1x1x128xf32>
    %84 = vector.shape_cast %83 : vector<1x1x1x128xf32> to vector<1x128xf32>
    %85 = vector.broadcast %84 : vector<1x128xf32> to vector<8x128xf32>
    %86 = arith.addf %82, %85 : vector<8x128xf32>
    %cst_68 = arith.constant 0.000000e+00 : f32
    %87 = vector.broadcast %cst_68 : f32 to vector<8x128xf32>
    %88 = arith.cmpf ogt, %86, %87 : vector<8x128xf32>
    %cst_69 = arith.constant 0.00999999977 : f32
    %89 = vector.broadcast %cst_69 : f32 to vector<8x128xf32>
    %90 = arith.mulf %89, %86 : vector<8x128xf32>
    %91 = arith.select %88, %86, %90 : vector<8x128xi1>, vector<8x128xf32>
    %c1_70 = arith.constant 1 : index
    %c1_71 = arith.constant 1 : index
    %c0_72 = arith.constant 0 : index
    %c0_73 = arith.constant 0 : index
    %92 = vector.load %arg6[%c1_70, %c1_71, %c0_72, %c0_73] : memref<2x2x128x128xf32, #tpu.memory_space<vmem>>, vector<1x1x128x128xf32>
    %93 = vector.shape_cast %92 : vector<1x1x128x128xf32> to vector<128x128xf32>
    %cst_74 = arith.constant dense<0.000000e+00> : vector<8x128xf32>
    %94 = tpu.matmul %91, %93, %cst_74 {dimension_numbers = #tpu.dot_dimension_numbers<[1], [0], [0], [1], [0, 0, 1, 1], [], []>} : vector<8x128xf32>, vector<128x128xf32>, vector<8x128xf32> -> vector<8x128xf32>
    %c1_75 = arith.constant 1 : index
    %c1_76 = arith.constant 1 : index
    %c0_77 = arith.constant 0 : index
    %c0_78 = arith.constant 0 : index
    %95 = vector.load %arg7[%c1_75, %c1_76, %c0_77, %c0_78] : memref<2x2x1x128xf32, #tpu.memory_space<vmem>>, vector<1x1x1x128xf32>
    %96 = vector.shape_cast %95 : vector<1x1x1x128xf32> to vector<1x128xf32>
    %97 = vector.broadcast %96 : vector<1x128xf32> to vector<8x128xf32>
    %98 = arith.addf %94, %97 : vector<8x128xf32>
    %cst_79 = arith.constant 0.000000e+00 : f32
    %99 = vector.broadcast %cst_79 : f32 to vector<8x128xf32>
    %100 = arith.cmpf ogt, %98, %99 : vector<8x128xf32>
    %cst_80 = arith.constant 0.00999999977 : f32
    %101 = vector.broadcast %cst_80 : f32 to vector<8x128xf32>
    %102 = arith.mulf %101, %98 : vector<8x128xf32>
    %103 = arith.select %100, %98, %102 : vector<8x128xi1>, vector<8x128xf32>
    %c1_81 = arith.constant 1 : index
    %c0_82 = arith.constant 0 : index
    %c0_83 = arith.constant 0 : index
    %104 = vector.load %arg8[%c1_81, %c0_82, %c0_83] : memref<2x128x128xf32, #tpu.memory_space<vmem>>, vector<1x128x128xf32>
    %105 = vector.shape_cast %104 : vector<1x128x128xf32> to vector<128x128xf32>
    %cst_84 = arith.constant dense<0.000000e+00> : vector<8x128xf32>
    %106 = tpu.matmul %103, %105, %cst_84 {dimension_numbers = #tpu.dot_dimension_numbers<[1], [0], [0], [1], [0, 0, 1, 1], [], []>} : vector<8x128xf32>, vector<128x128xf32>, vector<8x128xf32> -> vector<8x128xf32>
    %c1_85 = arith.constant 1 : index
    %c0_86 = arith.constant 0 : index
    %c0_87 = arith.constant 0 : index
    %107 = vector.load %arg9[%c1_85, %c0_86, %c0_87] : memref<2x1x128xf32, #tpu.memory_space<vmem>>, vector<1x1x128xf32>
    %108 = vector.shape_cast %107 : vector<1x1x128xf32> to vector<1x128xf32>
    %109 = vector.broadcast %108 : vector<1x128xf32> to vector<8x128xf32>
    %110 = arith.addf %106, %109 : vector<8x128xf32>
    %111 = math.tanh %110 : vector<8x128xf32>
    %c1_88 = arith.constant 1 : index
    %c0_89 = arith.constant 0 : index
    %c0_90 = arith.constant 0 : index
    %112 = vector.load %arg10[%c1_88, %c0_89, %c0_90] : memref<2x128x128xf32, #tpu.memory_space<vmem>>, vector<1x128x128xf32>
    %113 = vector.shape_cast %112 : vector<1x128x128xf32> to vector<128x128xf32>
    %cst_91 = arith.constant dense<0.000000e+00> : vector<8x128xf32>
    %114 = tpu.matmul %103, %113, %cst_91 {dimension_numbers = #tpu.dot_dimension_numbers<[1], [0], [0], [1], [0, 0, 1, 1], [], []>} : vector<8x128xf32>, vector<128x128xf32>, vector<8x128xf32> -> vector<8x128xf32>
    %c1_92 = arith.constant 1 : index
    %c0_93 = arith.constant 0 : index
    %c0_94 = arith.constant 0 : index
    %115 = vector.load %arg11[%c1_92, %c0_93, %c0_94] : memref<2x1x128xf32, #tpu.memory_space<vmem>>, vector<1x1x128xf32>
    %116 = vector.shape_cast %115 : vector<1x1x128xf32> to vector<1x128xf32>
    %117 = vector.broadcast %116 : vector<1x128xf32> to vector<8x128xf32>
    %118 = arith.addf %114, %117 : vector<8x128xf32>
    %119 = math.exp %111 : vector<8x128xf32>
    %120 = arith.mulf %12, %119 : vector<8x128xf32>
    %121 = arith.addf %120, %118 : vector<8x128xf32>
    %c0_95 = arith.constant 0 : index
    %c0_96 = arith.constant 0 : index
    %122 = vector.load %arg12[%c0_95, %c0_96] : memref<128x128xf32, #tpu.memory_space<vmem>>, vector<128x128xf32>
    %cst_97 = arith.constant dense<0.000000e+00> : vector<8x128xf32>
    %123 = tpu.matmul %67, %122, %cst_97 {dimension_numbers = #tpu.dot_dimension_numbers<[1], [0], [0], [1], [0, 0, 1, 1], [], []>} : vector<8x128xf32>, vector<128x128xf32>, vector<8x128xf32> -> vector<8x128xf32>
    %c0_98 = arith.constant 0 : index
    %c0_99 = arith.constant 0 : index
    %124 = vector.load %arg13[%c0_98, %c0_99] : memref<128x128xf32, #tpu.memory_space<vmem>>, vector<128x128xf32>
    %cst_100 = arith.constant dense<0.000000e+00> : vector<8x128xf32>
    %125 = tpu.matmul %121, %124, %cst_100 {dimension_numbers = #tpu.dot_dimension_numbers<[1], [0], [0], [1], [0, 0, 1, 1], [], []>} : vector<8x128xf32>, vector<128x128xf32>, vector<8x128xf32> -> vector<8x128xf32>
    %126 = arith.addf %123, %125 : vector<8x128xf32>
    %c0_101 = arith.constant 0 : index
    %c0_102 = arith.constant 0 : index
    %127 = vector.load %arg14[%c0_101, %c0_102] : memref<8x128xf32, #tpu.memory_space<vmem>>, vector<8x128xf32>
    tpu.vector_store %arg14[%c0_101, %c0_102], %126 {strides = array<i32>} : memref<8x128xf32, #tpu.memory_space<vmem>>, vector<8x128xf32>,
    %cst_103 = arith.constant dense<0.000000e+00> : vector<8xf32>
    %128 = vector.multi_reduction <add>, %57, %cst_103 [1] : vector<8x128xf32> to vector<8xf32>
    %129 = vector.shape_cast %128 : vector<8xf32> to vector<8x1xf32>
    %cst_104 = arith.constant dense<0.000000e+00> : vector<8xf32>
    %130 = vector.multi_reduction <add>, %111, %cst_104 [1] : vector<8x128xf32> to vector<8xf32>
    %131 = vector.shape_cast %130 : vector<8xf32> to vector<8x1xf32>
    %132 = arith.addf %129, %131 : vector<8x1xf32>
    %cst_105 = arith.constant 0.147802025 : f32
    %133 = vector.broadcast %cst_105 : f32 to vector<8x1xf32>
    %134 = arith.addf %132, %133 : vector<8x1xf32>
    %135 = vector.shape_cast %134 : vector<8x1xf32> to vector<8x1xf32>
    %136 = vector.broadcast %135 : vector<8x1xf32> to vector<8x128xf32>
    %c0_106 = arith.constant 0 : index
    %c0_107 = arith.constant 0 : index
    %137 = vector.load %arg15[%c0_106, %c0_107] : memref<8x128xf32, #tpu.memory_space<vmem>>, vector<8x128xf32>
    tpu.vector_store %arg15[%c0_106, %c0_107], %136 {strides = array<i32>} : memref<8x128xf32, #tpu.memory_space<vmem>>, vector<8x128xf32>,
    return
  }
  func.func @transform_0(%arg0: i32) -> (i32, i32) {
    %c0_i32 = arith.constant 0 : i32
    %c0_i32_0 = arith.constant 0 : i32
    return %arg0, %c0_i32 : i32, i32
  }
  func.func @transform_1(%arg0: i32) -> (i32, i32) {
    %c0_i32 = arith.constant 0 : i32
    %c0_i32_0 = arith.constant 0 : i32
    %c0_i32_1 = arith.constant 0 : i32
    return %c0_i32, %c0_i32_0 : i32, i32
  }
  func.func @transform_2(%arg0: i32) -> (i32, i32) {
    %c0_i32 = arith.constant 0 : i32
    %c0_i32_0 = arith.constant 0 : i32
    %c0_i32_1 = arith.constant 0 : i32
    return %c0_i32, %c0_i32_0 : i32, i32
  }
  func.func @transform_3(%arg0: i32) -> (i32, i32, i32) {
    %c0_i32 = arith.constant 0 : i32
    %c0_i32_0 = arith.constant 0 : i32
    %c0_i32_1 = arith.constant 0 : i32
    %c0_i32_2 = arith.constant 0 : i32
    return %c0_i32, %c0_i32_0, %c0_i32_1 : i32, i32, i32
  }
  func.func @transform_4(%arg0: i32) -> (i32, i32, i32) {
    %c0_i32 = arith.constant 0 : i32
    %c0_i32_0 = arith.constant 0 : i32
    %c0_i32_1 = arith.constant 0 : i32
    %c0_i32_2 = arith.constant 0 : i32
    return %c0_i32, %c0_i32_0, %c0_i32_1 : i32, i32, i32
  }
  func.func @transform_5(%arg0: i32) -> (i32, i32, i32, i32) {
    %c0_i32 = arith.constant 0 : i32
    %c0_i32_0 = arith.constant 0 : i32
    %c0_i32_1 = arith.constant 0 : i32
    %c0_i32_2 = arith.constant 0 : i32
    %c0_i32_3 = arith.constant 0 : i32
    return %c0_i32, %c0_i32_0, %c0_i32_1, %c0_i32_2 : i32, i32, i32, i32
  }
  func.func @transform_6(%arg0: i32) -> (i32, i32, i32, i32) {
    %c0_i32 = arith.constant 0 : i32
    %c0_i32_0 = arith.constant 0 : i32
    %c0_i32_1 = arith.constant 0 : i32
    %c0_i32_2 = arith.constant 0 : i32
    %c0_i32_3 = arith.constant 0 : i32
    return %c0_i32, %c0_i32_0, %c0_i32_1, %c0_i32_2 : i32, i32, i32, i32
  }
  func.func @transform_7(%arg0: i32) -> (i32, i32, i32) {
    %c0_i32 = arith.constant 0 : i32
    %c0_i32_0 = arith.constant 0 : i32
    %c0_i32_1 = arith.constant 0 : i32
    %c0_i32_2 = arith.constant 0 : i32
    return %c0_i32, %c0_i32_0, %c0_i32_1 : i32, i32, i32
  }
  func.func @transform_8(%arg0: i32) -> (i32, i32, i32) {
    %c0_i32 = arith.constant 0 : i32
    %c0_i32_0 = arith.constant 0 : i32
    %c0_i32_1 = arith.constant 0 : i32
    %c0_i32_2 = arith.constant 0 : i32
    return %c0_i32, %c0_i32_0, %c0_i32_1 : i32, i32, i32
  }
  func.func @transform_9(%arg0: i32) -> (i32, i32, i32) {
    %c0_i32 = arith.constant 0 : i32
    %c0_i32_0 = arith.constant 0 : i32
    %c0_i32_1 = arith.constant 0 : i32
    %c0_i32_2 = arith.constant 0 : i32
    return %c0_i32, %c0_i32_0, %c0_i32_1 : i32, i32, i32
  }
  func.func @transform_10(%arg0: i32) -> (i32, i32, i32) {
    %c0_i32 = arith.constant 0 : i32
    %c0_i32_0 = arith.constant 0 : i32
    %c0_i32_1 = arith.constant 0 : i32
    %c0_i32_2 = arith.constant 0 : i32
    return %c0_i32, %c0_i32_0, %c0_i32_1 : i32, i32, i32
  }
  func.func @transform_11(%arg0: i32) -> (i32, i32) {
    %c0_i32 = arith.constant 0 : i32
    %c0_i32_0 = arith.constant 0 : i32
    %c0_i32_1 = arith.constant 0 : i32
    return %c0_i32, %c0_i32_0 : i32, i32
  }
  func.func @transform_12(%arg0: i32) -> (i32, i32) {
    %c0_i32 = arith.constant 0 : i32
    %c0_i32_0 = arith.constant 0 : i32
    %c0_i32_1 = arith.constant 0 : i32
    return %c0_i32, %c0_i32_0 : i32, i32
  }
  func.func @transform_13(%arg0: i32) -> (i32, i32) {
    %c0_i32 = arith.constant 0 : i32
    %c0_i32_0 = arith.constant 0 : i32
    return %arg0, %c0_i32 : i32, i32
  }
  func.func @transform_14(%arg0: i32) -> (i32, i32) {
    %c0_i32 = arith.constant 0 : i32
    %c0_i32_0 = arith.constant 0 : i32
    return %arg0, %c0_i32 : i32, i32
  }
}

</mosaic_0001>

<llo_original>
// kernel: tpu_custom_call.1
$region0: #{tpu_custom_call.1}
  #allocation0 [shape = 'u32[]', space=smem, size = 0x4, offset = 0x4, fixed_abs, tag = 'smem constant byte address 0x4 - core index']
  #allocation1 [shape = 'u32[144,128]{1,0:T(1,128)}', space=vmem, size = 0x12000, scoped, tag = 'internal scratch']
  %s0 = inlined_call_operand.hbm [shape: f32[8,256], index: 0, kind: input, shape index: {}]
  %s1 = inlined_call_operand.vmem [shape: f32[1,256], index: 1, kind: input, shape index: {}]
  %s2 = inlined_call_operand.hbm [shape: f32[1,256], index: 2, kind: input, shape index: {}]
  %s3 = inlined_call_operand.hbm [shape: f32[2,128,128], index: 3, kind: input, shape index: {}]
  %s4 = inlined_call_operand.vmem [shape: f32[2,1,128], index: 4, kind: input, shape index: {}]
  %s5 = inlined_call_operand.hbm [shape: f32[2,2,128,128], index: 5, kind: input, shape index: {}]
  %s6 = inlined_call_operand.vmem [shape: f32[2,2,1,128], index: 6, kind: input, shape index: {}]
  %s7 = inlined_call_operand.hbm [shape: f32[2,128,128], index: 7, kind: input, shape index: {}]
  %s8 = inlined_call_operand.vmem [shape: f32[2,1,128], index: 8, kind: input, shape index: {}]
  %s9 = inlined_call_operand.hbm [shape: f32[2,128,128], index: 9, kind: input, shape index: {}]
  %s10 = inlined_call_operand.vmem [shape: f32[2,1,128], index: 10, kind: input, shape index: {}]
  %s11 = inlined_call_operand.hbm [shape: f32[128,128], index: 11, kind: input, shape index: {}]
  %s12 = inlined_call_operand.hbm [shape: f32[128,128], index: 12, kind: input, shape index: {}]
  %s13 = inlined_call_operand.hbm [shape: f32[8,128], index: 13, kind: output, shape index: {0}]
  %s14 = inlined_call_operand.hbm [shape: f32[8,128], index: 14, kind: output, shape index: {1}]
  %15 = xla_tuple %s13, %s14
  %s16 = sld [smem:[#allocation0]]
  $region102: #{tpu_custom_call.1} parent=0
    _
  %s18 = ssub.s32 1, %s16
  %s19 = scalar_select 0, %s18, %s16
  $region1: #{tpu_custom_call.1} parent=0
    #allocation2 [shape = 'u8[8192]{0}', space=vmem, size = 0x2000, scoped, tag = 'input window, operand 0, single buffered']
    #allocation3 [shape = 's32[1]{0}', space=sflag, size = 0x4, scoped, tag = 'scoped memory for tpu_custom_call.1']
    #allocation4 [shape = 's32[1]{0}', space=sflag, size = 0x4, scoped, tag = 'scoped memory for tpu_custom_call.1']
    #allocation5 [shape = 'u8[1024]{0}', space=vmem, size = 0x400, scoped, tag = 'input window, operand 2, single buffered']
    #allocation6 [shape = 's32[1]{0}', space=sflag, size = 0x4, scoped, tag = 'scoped memory for tpu_custom_call.1']
    #allocation7 [shape = 'u8[131072]{0}', space=vmem, size = 0x20000, scoped, tag = 'input window, operand 3, single buffered']
    #allocation8 [shape = 'u8[262144]{0}', space=vmem, size = 0x40000, scoped, tag = 'input window, operand 5, single buffered']
    #allocation9 [shape = 's32[1]{0}', space=sflag, size = 0x4, scoped, tag = 'scoped memory for tpu_custom_call.1']
    #allocation10 [shape = 'u8[131072]{0}', space=vmem, size = 0x20000, scoped, tag = 'input window, operand 7, single buffered']
    #allocation11 [shape = 'u8[131072]{0}', space=vmem, size = 0x20000, scoped, tag = 'input window, operand 9, single buffered']
    #allocation12 [shape = 's32[1]{0}', space=sflag, size = 0x4, scoped, tag = 'scoped memory for tpu_custom_call.1']
    #allocation13 [shape = 'u8[65536]{0}', space=vmem, size = 0x10000, scoped, tag = 'input window, operand 11, single buffered']
    #allocation14 [shape = 'u8[65536]{0}', space=vmem, size = 0x10000, scoped, tag = 'input window, operand 12, single buffered']
    #allocation15 [shape = 's32[1]{0}', space=sflag, size = 0x4, scoped, tag = 'scoped memory for tpu_custom_call.1']
    #allocation16 [shape = 'u8[4096]{0}', space=vmem, size = 0x1000, scoped, tag = 'output window, operand 0, single buffered']
    #allocation17 [shape = 'u8[4096]{0}', space=vmem, size = 0x1000, scoped, tag = 'output window, operand 1, single buffered']
    #allocation18 [shape = 's32[1]{0}', space=sflag, size = 0x4, scoped, tag = 'scoped memory for tpu_custom_call.1']
    %20 = vsyncpa [#allocation3], 0
    %21 = vsyncpa [#allocation6], 0
    %22 = vsyncpa [#allocation9], 0
    %23 = vsyncpa [#allocation12], 0
    %24 = vsyncpa [#allocation15], 0
    %25 = vsyncpa [#allocation4], 0
    %26 = vsyncpa [#allocation18], 0
    // Predicated region
    $region2: #{tpu_custom_call.1} parent=1 // pred_check
      _
    $region3: #{tpu_custom_call.1} parent=1 // pred_check_branch
      %28 = sbr.rel (0) target = $region5
    $region4: #{tpu_custom_call.1} parent=1 // pred_region
      %s30 = ssub.s32 256, 256
      %31 = vsyncadd [#allocation3], %s30
      %s33 = sshll.u32 [#allocation2], 4
      %s34 = int_to_ptr.vmem [resolvable:$true] %s33
      %36 = dma.hbm_to_vmem [thread:$0]  %s0, 256, %s34, [#allocation3]
    $region5: #{tpu_custom_call.1} parent=1 // pred_fallthru
      _
    // Predicated region
    $region6: #{tpu_custom_call.1} parent=1 // pred_check
      _
    $region7: #{tpu_custom_call.1} parent=1 // pred_check_branch
      %38 = sbr.rel (0) target = $region9
    $region8: #{tpu_custom_call.1} parent=1 // pred_region
      _
    $region9: #{tpu_custom_call.1} parent=1 // pred_fallthru
      _
    // Predicated region
    $region10: #{tpu_custom_call.1} parent=1 // pred_check
      _
    $region11: #{tpu_custom_call.1} parent=1 // pred_check_branch
      %40 = sbr.rel (0) target = $region13
    $region12: #{tpu_custom_call.1} parent=1 // pred_region
      %s42 = ssub.s32 32, 32
      %43 = vsyncadd [#allocation6], %s42
      %s45 = sshll.u32 [#allocation5], 4
      %s46 = int_to_ptr.vmem [resolvable:$true] %s45
      %48 = dma.hbm_to_vmem [thread:$0]  %s2, 32, %s46, [#allocation6]
    $region13: #{tpu_custom_call.1} parent=1 // pred_fallthru
      _
    // Predicated region
    $region14: #{tpu_custom_call.1} parent=1 // pred_check
      _
    $region15: #{tpu_custom_call.1} parent=1 // pred_check_branch
      %50 = sbr.rel (0) target = $region17
    $region16: #{tpu_custom_call.1} parent=1 // pred_region
      %s52 = ssub.s32 4096, 4096
      %53 = vsyncadd [#allocation6], %s52
      %s54 = sshll.u32 [#allocation7], 4
      %s55 = int_to_ptr.vmem [resolvable:$true] %s54
      %60 = dma.hbm_to_vmem [thread:$0]  %s3, 4096, %s55, [#allocation6], 128, 128, 8
    $region17: #{tpu_custom_call.1} parent=1 // pred_fallthru
      _
    // Predicated region
    $region18: #{tpu_custom_call.1} parent=1 // pred_check
      _
    $region19: #{tpu_custom_call.1} parent=1 // pred_check_branch
      %62 = sbr.rel (0) target = $region21
    $region20: #{tpu_custom_call.1} parent=1 // pred_region
      _
    $region21: #{tpu_custom_call.1} parent=1 // pred_fallthru
      _
    // Predicated region
    $region22: #{tpu_custom_call.1} parent=1 // pred_check
      _
    $region23: #{tpu_custom_call.1} parent=1 // pred_check_branch
      %64 = sbr.rel (0) target = $region25
    $region24: #{tpu_custom_call.1} parent=1 // pred_region
      %s66 = ssub.s32 8192, 8192
      %67 = vsyncadd [#allocation9], %s66
      %s68 = sshll.u32 [#allocation8], 4
      %s69 = int_to_ptr.vmem [resolvable:$true] %s68
      %74 = dma.hbm_to_vmem [thread:$0]  %s5, 8192, %s69, [#allocation9], 128, 128, 8
    $region25: #{tpu_custom_call.1} parent=1 // pred_fallthru
      _
    // Predicated region
    $region26: #{tpu_custom_call.1} parent=1 // pred_check
      _
    $region27: #{tpu_custom_call.1} parent=1 // pred_check_branch
      %76 = sbr.rel (0) target = $region29
    $region28: #{tpu_custom_call.1} parent=1 // pred_region
      _
    $region29: #{tpu_custom_call.1} parent=1 // pred_fallthru
      _
    // Predicated region
    $region30: #{tpu_custom_call.1} parent=1 // pred_check
      _
    $region31: #{tpu_custom_call.1} parent=1 // pred_check_branch
      %78 = sbr.rel (0) target = $region33
    $region32: #{tpu_custom_call.1} parent=1 // pred_region
      %s80 = ssub.s32 4096, 4096
      %81 = vsyncadd [#allocation9], %s80
      %s82 = sshll.u32 [#allocation10], 4
      %s83 = int_to_ptr.vmem [resolvable:$true] %s82
      %88 = dma.hbm_to_vmem [thread:$0]  %s7, 4096, %s83, [#allocation9], 128, 128, 8
    $region33: #{tpu_custom_call.1} parent=1 // pred_fallthru
      _
    // Predicated region
    $region34: #{tpu_custom_call.1} parent=1 // pred_check
      _
    $region35: #{tpu_custom_call.1} parent=1 // pred_check_branch
      %90 = sbr.rel (0) target = $region37
    $region36: #{tpu_custom_call.1} parent=1 // pred_region
      _
    $region37: #{tpu_custom_call.1} parent=1 // pred_fallthru
      _
    // Predicated region
    $region38: #{tpu_custom_call.1} parent=1 // pred_check
      _
    $region39: #{tpu_custom_call.1} parent=1 // pred_check_branch
      %92 = sbr.rel (0) target = $region41
    $region40: #{tpu_custom_call.1} parent=1 // pred_region
      %s94 = ssub.s32 4096, 4096
      %95 = vsyncadd [#allocation12], %s94
      %s96 = sshll.u32 [#allocation11], 4
      %s97 = int_to_ptr.vmem [resolvable:$true] %s96
      %102 = dma.hbm_to_vmem [thread:$0]  %s9, 4096, %s97, [#allocation12], 128, 128, 8
    $region41: #{tpu_custom_call.1} parent=1 // pred_fallthru
      _
    // Predicated region
    $region42: #{tpu_custom_call.1} parent=1 // pred_check
      _
    $region43: #{tpu_custom_call.1} parent=1 // pred_check_branch
      %104 = sbr.rel (0) target = $region45
    $region44: #{tpu_custom_call.1} parent=1 // pred_region
      _
    $region45: #{tpu_custom_call.1} parent=1 // pred_fallthru
      _
    // Predicated region
    $region46: #{tpu_custom_call.1} parent=1 // pred_check
      _
    $region47: #{tpu_custom_call.1} parent=1 // pred_check_branch
      %106 = sbr.rel (0) target = $region49
    $region48: #{tpu_custom_call.1} parent=1 // pred_region
      %s108 = ssub.s32 2048, 2048
      %109 = vsyncadd [#allocation12], %s108
      %s110 = sshll.u32 [#allocation13], 4
      %s111 = int_to_ptr.vmem [resolvable:$true] %s110
      %116 = dma.hbm_to_vmem [thread:$0]  %s11, 2048, %s111, [#allocation12], 128, 128, 8
    $region49: #{tpu_custom_call.1} parent=1 // pred_fallthru
      _
    // Predicated region
    $region50: #{tpu_custom_call.1} parent=1 // pred_check
      _
    $region51: #{tpu_custom_call.1} parent=1 // pred_check_branch
      %118 = sbr.rel (0) target = $region53
    $region52: #{tpu_custom_call.1} parent=1 // pred_region
      %s120 = ssub.s32 2048, 2048
      %121 = vsyncadd [#allocation15], %s120
      %s122 = sshll.u32 [#allocation14], 4
      %s123 = int_to_ptr.vmem [resolvable:$true] %s122
      %128 = dma.hbm_to_vmem [thread:$0]  %s12, 2048, %s123, [#allocation15], 128, 128, 8
    $region53: #{tpu_custom_call.1} parent=1 // pred_fallthru
      _
    // Predicated region
    $region54: #{tpu_custom_call.1} parent=1 // pred_check
      _
    $region55: #{tpu_custom_call.1} parent=1 // pred_check_branch
      %130 = sbr.rel (0) target = $region57
    $region56: #{tpu_custom_call.1} parent=1 // pred_region
      %131 = dma.done [#allocation3], 256
    $region57: #{tpu_custom_call.1} parent=1 // pred_fallthru
      _
    // Predicated region
    $region58: #{tpu_custom_call.1} parent=1 // pred_check
      _
    $region59: #{tpu_custom_call.1} parent=1 // pred_check_branch
      %133 = sbr.rel (0) target = $region61
    $region60: #{tpu_custom_call.1} parent=1 // pred_region
      %134 = dma.done [#allocation6], 32
    $region61: #{tpu_custom_call.1} parent=1 // pred_fallthru
      _
    // Predicated region
    $region62: #{tpu_custom_call.1} parent=1 // pred_check
      _
    $region63: #{tpu_custom_call.1} parent=1 // pred_check_branch
      %136 = sbr.rel (0) target = $region65
    $region64: #{tpu_custom_call.1} parent=1 // pred_region
      %137 = dma.done [#allocation6], 4096
    $region65: #{tpu_custom_call.1} parent=1 // pred_fallthru
      _
    // Predicated region
    $region66: #{tpu_custom_call.1} parent=1 // pred_check
      _
    $region67: #{tpu_custom_call.1} parent=1 // pred_check_branch
      %139 = sbr.rel (0) target = $region69
    $region68: #{tpu_custom_call.1} parent=1 // pred_region
      %140 = dma.done [#allocation9], 8192
    $region69: #{tpu_custom_call.1} parent=1 // pred_fallthru
      _
    // Predicated region
    $region70: #{tpu_custom_call.1} parent=1 // pred_check
      _
    $region71: #{tpu_custom_call.1} parent=1 // pred_check_branch
      %142 = sbr.rel (0) target = $region73
    $region72: #{tpu_custom_call.1} parent=1 // pred_region
      %143 = dma.done [#allocation9], 4096
    $region73: #{tpu_custom_call.1} parent=1 // pred_fallthru
      _
    // Predicated region
    $region74: #{tpu_custom_call.1} parent=1 // pred_check
      _
    $region75: #{tpu_custom_call.1} parent=1 // pred_check_branch
      %145 = sbr.rel (0) target = $region77
    $region76: #{tpu_custom_call.1} parent=1 // pred_region
      %146 = dma.done [#allocation12], 4096
    $region77: #{tpu_custom_call.1} parent=1 // pred_fallthru
      _
    // Predicated region
    $region78: #{tpu_custom_call.1} parent=1 // pred_check
      _
    $region79: #{tpu_custom_call.1} parent=1 // pred_check_branch
      %148 = sbr.rel (0) target = $region81
    $region80: #{tpu_custom_call.1} parent=1 // pred_region
      %149 = dma.done [#allocation12], 2048
    $region81: #{tpu_custom_call.1} parent=1 // pred_fallthru
      _
    // Predicated region
    $region82: #{tpu_custom_call.1} parent=1 // pred_check
      _
    $region83: #{tpu_custom_call.1} parent=1 // pred_check_branch
      %151 = sbr.rel (0) target = $region85
    $region84: #{tpu_custom_call.1} parent=1 // pred_region
      %152 = dma.done [#allocation15], 2048
    $region85: #{tpu_custom_call.1} parent=1 // pred_fallthru
      _
    %v153 = vld [vmem:[#allocation2] sm:$0xff]
    %v154 = vld [vmem:[#allocation2 + $0x8] sm:$0xff]
    %v155 = vld [vmem:[%s1] sm:$0x3]
    %v156 = vld [vmem:[#allocation5] sm:$0x3]
    %v158 = vlaneseq
    %v159 = vshrl.u32 %v158, 7
    %v160 = vsub.s32 0, %v159
    %v161 = vrot.slane %v156, %v160
    %v162 = vlaneseq
    %v163 = vshrl.u32 %v162, 7
    %v164 = vsub.s32 1, %v163
    %v165 = vrot.slane %v156, %v164
    %v168 = vadd.f32 %v153, %v161
    %v169 = vadd.f32 %v154, %v165
    %v171 = vlaneseq
    %v172 = vshrl.u32 %v171, 7
    %v173 = vsub.s32 0, %v172
    %v174 = vrot.slane %v155, %v173
    %v175 = vlaneseq
    %v176 = vshrl.u32 %v175, 7
    %v177 = vsub.s32 1, %v176
    %v178 = vrot.slane %v155, %v177
    %v181 = vmul.f32 %v174, %v168
    %v182 = vmul.f32 %v178, %v169
    %vm183 = vcmp.ge.f32.partialorder %v181, 0.0
    %vm184 = vcmp.ge.f32.partialorder %v182, 0.0
    %v185 = vmul.f32 %v181, 0.95
    %v186 = vmul.f32 %v182, 0.95
    %v187 = vsel %vm183, %v181, %v185
    %v188 = vsel %vm184, %v182, %v186
    %v189 = vld [vmem:[#allocation7] sm:$0xff]
    %v190 = vld [vmem:[#allocation7 + $0x8] sm:$0xff]
    %v191 = vld [vmem:[#allocation7 + $0x10] sm:$0xff]
    %v192 = vld [vmem:[#allocation7 + $0x18] sm:$0xff]
    %v193 = vld [vmem:[#allocation7 + $0x20] sm:$0xff]
    %v194 = vld [vmem:[#allocation7 + $0x28] sm:$0xff]
    %v195 = vld [vmem:[#allocation7 + $0x30] sm:$0xff]
    %v196 = vld [vmem:[#allocation7 + $0x38] sm:$0xff]
    %v197 = vld [vmem:[#allocation7 + $0x40] sm:$0xff]
    %v198 = vld [vmem:[#allocation7 + $0x48] sm:$0xff]
    %v199 = vld [vmem:[#allocation7 + $0x50] sm:$0xff]
    %v200 = vld [vmem:[#allocation7 + $0x58] sm:$0xff]
    %v201 = vld [vmem:[#allocation7 + $0x60] sm:$0xff]
    %v202 = vld [vmem:[#allocation7 + $0x68] sm:$0xff]
    %v203 = vld [vmem:[#allocation7 + $0x70] sm:$0xff]
    %v204 = vld [vmem:[#allocation7 + $0x78] sm:$0xff]
    %v205 = vld [vmem:[%s4] sm:$0x1]
    %v207 = vlaneseq
    %v208 = vshrl.u32 %v207, 7
    %v209 = vsub.s32 0, %v208
    %v210 = vrot.slane %v205, %v209
    %212 = vmatprep.subr.mxu0 0.0
    %213 = vmatpush1.msra.mxu0 %v189
    %214 = vmatprep.subr.mxu0 0.0
    %215 = vmatpush1.msra.mxu0 %v190
    %216 = vmatprep.subr.mxu0 0.0
    %217 = vmatpush1.msra.mxu0 %v191
    %218 = vmatprep.subr.mxu0 0.0
    %219 = vmatpush1.msra.mxu0 %v192
    %220 = vmatprep.subr.mxu0 0.0
    %221 = vmatpush1.msra.mxu0 %v193
    %222 = vmatprep.subr.mxu0 0.0
    %223 = vmatpush1.msra.mxu0 %v194
    %224 = vmatprep.subr.mxu0 0.0
    %225 = vmatpush1.msra.mxu0 %v195
    %226 = vmatprep.subr.mxu0 0.0
    %227 = vmatpush1.msra.mxu0 %v196
    %228 = vmatprep.subr.mxu0 0.0
    %229 = vmatpush1.msra.mxu0 %v197
    %230 = vmatprep.subr.mxu0 0.0
    %231 = vmatpush1.msra.mxu0 %v198
    %232 = vmatprep.subr.mxu0 0.0
    %233 = vmatpush1.msra.mxu0 %v199
    %234 = vmatprep.subr.mxu0 0.0
    %235 = vmatpush1.msra.mxu0 %v200
    %236 = vmatprep.subr.mxu0 0.0
    %237 = vmatpush1.msra.mxu0 %v201
    %238 = vmatprep.subr.mxu0 0.0
    %239 = vmatpush1.msra.mxu0 %v202
    %240 = vmatprep.subr.mxu0 0.0
    %241 = vmatpush1.msra.mxu0 %v203
    %242 = vmatprep.subr.mxu0 0.0
    %243 = vmatpush1.msra.mxu0 %v204
    %244 = vmatprep.subr.mxu0 0.0
    %245 = vmatpush1.msra.mxu0 0.0
    %246 = vmatprep.subr.mxu0 0.0
    %247 = vmatpush1.msra.mxu0 0.0
    %248 = vmatprep.subr.mxu0 0.0
    %249 = vmatpush1.msra.mxu0 0.0
    %250 = vmatprep.subr.mxu0 0.0
    %251 = vmatpush1.msra.mxu0 0.0
    %252 = vmatprep.subr.mxu0 0.0
    %253 = vmatpush1.msra.mxu0 0.0
    %254 = vmatprep.subr.mxu0 0.0
    %255 = vmatpush1.msra.mxu0 0.0
    %256 = vmatprep.subr.mxu0 0.0
    %257 = vmatpush1.msra.mxu0 0.0
    %258 = vmatprep.subr.mxu0 0.0
    %259 = vmatpush1.msra.mxu0 0.0
    %260 = vmatprep.subr.mxu0 0.0
    %261 = vmatpush1.msra.mxu0 0.0
    %262 = vmatprep.subr.mxu0 0.0
    %263 = vmatpush1.msra.mxu0 0.0
    %264 = vmatprep.subr.mxu0 0.0
    %265 = vmatpush1.msra.mxu0 0.0
    %266 = vmatprep.subr.mxu0 0.0
    %267 = vmatpush1.msra.mxu0 0.0
    %268 = vmatprep.subr.mxu0 0.0
    %269 = vmatpush1.msra.mxu0 0.0
    %270 = vmatprep.subr.mxu0 0.0
    %271 = vmatpush1.msra.mxu0 0.0
    %272 = vmatprep.subr.mxu0 0.0
    %273 = vmatpush1.msra.mxu0 0.0
    %274 = vmatprep.subr.mxu0 0.0
    %275 = vmatpush1.msra.mxu0 0.0
    %276 = vmatprep.mubr.f32.mxu0 0.0
    %277 = vmatmul.mubr.f32.gmra.mrb[0].mxu0 %v187
    %v278 = vpop.f32.mrb[0].mxu0
    %v279 = vadd.f32 %v210, %v278
    %v280 = vpop.f32.mrb[0].mxu0
    %281 = vdwg.mxu0
    %vm282 = vcmp.gt.f32.partialorder %v279, 0.0
    %v283 = vmul.f32 %v279, 0.01
    %v284 = vsel %vm282, %v279, %v283
    %v285 = vld [vmem:[#allocation8] sm:$0xff]
    %v286 = vld [vmem:[#allocation8 + $0x8] sm:$0xff]
    %v287 = vld [vmem:[#allocation8 + $0x10] sm:$0xff]
    %v288 = vld [vmem:[#allocation8 + $0x18] sm:$0xff]
    %v289 = vld [vmem:[#allocation8 + $0x20] sm:$0xff]
    %v290 = vld [vmem:[#allocation8 + $0x28] sm:$0xff]
    %v291 = vld [vmem:[#allocation8 + $0x30] sm:$0xff]
    %v292 = vld [vmem:[#allocation8 + $0x38] sm:$0xff]
    %v293 = vld [vmem:[#allocation8 + $0x40] sm:$0xff]
    %v294 = vld [vmem:[#allocation8 + $0x48] sm:$0xff]
    %v295 = vld [vmem:[#allocation8 + $0x50] sm:$0xff]
    %v296 = vld [vmem:[#allocation8 + $0x58] sm:$0xff]
    %v297 = vld [vmem:[#allocation8 + $0x60] sm:$0xff]
    %v298 = vld [vmem:[#allocation8 + $0x68] sm:$0xff]
    %v299 = vld [vmem:[#allocation8 + $0x70] sm:$0xff]
    %v300 = vld [vmem:[#allocation8 + $0x78] sm:$0xff]
    %v301 = vld [vmem:[%s6] sm:$0x1]
    %v303 = vlaneseq
    %v304 = vshrl.u32 %v303, 7
    %v305 = vsub.s32 0, %v304
    %v306 = vrot.slane %v301, %v305
    %308 = vmatprep.subr.mxu0 0.0
    %309 = vmatpush1.msra.mxu0 %v285
    %310 = vmatprep.subr.mxu0 0.0
    %311 = vmatpush1.msra.mxu0 %v286
    %312 = vmatprep.subr.mxu0 0.0
    %313 = vmatpush1.msra.mxu0 %v287
    %314 = vmatprep.subr.mxu0 0.0
    %315 = vmatpush1.msra.mxu0 %v288
    %316 = vmatprep.subr.mxu0 0.0
    %317 = vmatpush1.msra.mxu0 %v289
    %318 = vmatprep.subr.mxu0 0.0
    %319 = vmatpush1.msra.mxu0 %v290
    %320 = vmatprep.subr.mxu0 0.0
    %321 = vmatpush1.msra.mxu0 %v291
    %322 = vmatprep.subr.mxu0 0.0
    %323 = vmatpush1.msra.mxu0 %v292
    %324 = vmatprep.subr.mxu0 0.0
    %325 = vmatpush1.msra.mxu0 %v293
    %326 = vmatprep.subr.mxu0 0.0
    %327 = vmatpush1.msra.mxu0 %v294
    %328 = vmatprep.subr.mxu0 0.0
    %329 = vmatpush1.msra.mxu0 %v295
    %330 = vmatprep.subr.mxu0 0.0
    %331 = vmatpush1.msra.mxu0 %v296
    %332 = vmatprep.subr.mxu0 0.0
    %333 = vmatpush1.msra.mxu0 %v297
    %334 = vmatprep.subr.mxu0 0.0
    %335 = vmatpush1.msra.mxu0 %v298
    %336 = vmatprep.subr.mxu0 0.0
    %337 = vmatpush1.msra.mxu0 %v299
    %338 = vmatprep.subr.mxu0 0.0
    %339 = vmatpush1.msra.mxu0 %v300
    %340 = vmatprep.subr.mxu0 0.0
    %341 = vmatpush1.msra.mxu0 0.0
    %342 = vmatprep.subr.mxu0 0.0
    %343 = vmatpush1.msra.mxu0 0.0
    %344 = vmatprep.subr.mxu0 0.0
    %345 = vmatpush1.msra.mxu0 0.0
    %346 = vmatprep.subr.mxu0 0.0
    %347 = vmatpush1.msra.mxu0 0.0
    %348 = vmatprep.subr.mxu0 0.0
    %349 = vmatpush1.msra.mxu0 0.0
    %350 = vmatprep.subr.mxu0 0.0
    %351 = vmatpush1.msra.mxu0 0.0
    %352 = vmatprep.subr.mxu0 0.0
    %353 = vmatpush1.msra.mxu0 0.0
    %354 = vmatprep.subr.mxu0 0.0
    %355 = vmatpush1.msra.mxu0 0.0
    %356 = vmatprep.subr.mxu0 0.0
    %357 = vmatpush1.msra.mxu0 0.0
    %358 = vmatprep.subr.mxu0 0.0
    %359 = vmatpush1.msra.mxu0 0.0
    %360 = vmatprep.subr.mxu0 0.0
    %361 = vmatpush1.msra.mxu0 0.0
    %362 = vmatprep.subr.mxu0 0.0
    %363 = vmatpush1.msra.mxu0 0.0
    %364 = vmatprep.subr.mxu0 0.0
    %365 = vmatpush1.msra.mxu0 0.0
    %366 = vmatprep.subr.mxu0 0.0
    %367 = vmatpush1.msra.mxu0 0.0
    %368 = vmatprep.subr.mxu0 0.0
    %369 = vmatpush1.msra.mxu0 0.0
    %370 = vmatprep.subr.mxu0 0.0
    %371 = vmatpush1.msra.mxu0 0.0
    %372 = vmatprep.mubr.f32.mxu0 0.0
    %373 = vmatmul.mubr.f32.gmra.mrb[0].mxu0 %v284
    %v374 = vpop.f32.mrb[0].mxu0
    %v375 = vadd.f32 %v306, %v374
    %v376 = vpop.f32.mrb[0].mxu0
    %377 = vdwg.mxu0
    %vm378 = vcmp.gt.f32.partialorder %v375, 0.0
    %v379 = vmul.f32 %v375, 0.01
    %v380 = vsel %vm378, %v375, %v379
    %s381 = scalar_lea.vmem [#allocation8], 128
    %v382 = vld [vmem:[%s381] sm:$0xff]
    %v383 = vld [vmem:[%s381 + $0x8] sm:$0xff]
    %v384 = vld [vmem:[%s381 + $0x10] sm:$0xff]
    %v385 = vld [vmem:[%s381 + $0x18] sm:$0xff]
    %v386 = vld [vmem:[%s381 + $0x20] sm:$0xff]
    %v387 = vld [vmem:[%s381 + $0x28] sm:$0xff]
    %v388 = vld [vmem:[%s381 + $0x30] sm:$0xff]
    %v389 = vld [vmem:[%s381 + $0x38] sm:$0xff]
    %v390 = vld [vmem:[%s381 + $0x40] sm:$0xff]
    %v391 = vld [vmem:[%s381 + $0x48] sm:$0xff]
    %v392 = vld [vmem:[%s381 + $0x50] sm:$0xff]
    %v393 = vld [vmem:[%s381 + $0x58] sm:$0xff]
    %v394 = vld [vmem:[%s381 + $0x60] sm:$0xff]
    %v395 = vld [vmem:[%s381 + $0x68] sm:$0xff]
    %v396 = vld [vmem:[%s381 + $0x70] sm:$0xff]
    %v397 = vld [vmem:[%s381 + $0x78] sm:$0xff]
    %s398 = scalar_lea.vmem %s6, 1
    %v399 = vld [vmem:[%s398] sm:$0x1]
    %v401 = vlaneseq
    %v402 = vshrl.u32 %v401, 7
    %v403 = vsub.s32 0, %v402
    %v404 = vrot.slane %v399, %v403
    %406 = vmatprep.subr.mxu0 0.0
    %407 = vmatpush1.msra.mxu0 %v382
    %408 = vmatprep.subr.mxu0 0.0
    %409 = vmatpush1.msra.mxu0 %v383
    %410 = vmatprep.subr.mxu0 0.0
    %411 = vmatpush1.msra.mxu0 %v384
    %412 = vmatprep.subr.mxu0 0.0
    %413 = vmatpush1.msra.mxu0 %v385
    %414 = vmatprep.subr.mxu0 0.0
    %415 = vmatpush1.msra.mxu0 %v386
    %416 = vmatprep.subr.mxu0 0.0
    %417 = vmatpush1.msra.mxu0 %v387
    %418 = vmatprep.subr.mxu0 0.0
    %419 = vmatpush1.msra.mxu0 %v388
    %420 = vmatprep.subr.mxu0 0.0
    %421 = vmatpush1.msra.mxu0 %v389
    %422 = vmatprep.subr.mxu0 0.0
    %423 = vmatpush1.msra.mxu0 %v390
    %424 = vmatprep.subr.mxu0 0.0
    %425 = vmatpush1.msra.mxu0 %v391
    %426 = vmatprep.subr.mxu0 0.0
    %427 = vmatpush1.msra.mxu0 %v392
    %428 = vmatprep.subr.mxu0 0.0
    %429 = vmatpush1.msra.mxu0 %v393
    %430 = vmatprep.subr.mxu0 0.0
    %431 = vmatpush1.msra.mxu0 %v394
    %432 = vmatprep.subr.mxu0 0.0
    %433 = vmatpush1.msra.mxu0 %v395
    %434 = vmatprep.subr.mxu0 0.0
    %435 = vmatpush1.msra.mxu0 %v396
    %436 = vmatprep.subr.mxu0 0.0
    %437 = vmatpush1.msra.mxu0 %v397
    %438 = vmatprep.subr.mxu0 0.0
    %439 = vmatpush1.msra.mxu0 0.0
    %440 = vmatprep.subr.mxu0 0.0
    %441 = vmatpush1.msra.mxu0 0.0
    %442 = vmatprep.subr.mxu0 0.0
    %443 = vmatpush1.msra.mxu0 0.0
    %444 = vmatprep.subr.mxu0 0.0
    %445 = vmatpush1.msra.mxu0 0.0
    %446 = vmatprep.subr.mxu0 0.0
    %447 = vmatpush1.msra.mxu0 0.0
    %448 = vmatprep.subr.mxu0 0.0
    %449 = vmatpush1.msra.mxu0 0.0
    %450 = vmatprep.subr.mxu0 0.0
    %451 = vmatpush1.msra.mxu0 0.0
    %452 = vmatprep.subr.mxu0 0.0
    %453 = vmatpush1.msra.mxu0 0.0
    %454 = vmatprep.subr.mxu0 0.0
    %455 = vmatpush1.msra.mxu0 0.0
    %456 = vmatprep.subr.mxu0 0.0
    %457 = vmatpush1.msra.mxu0 0.0
    %458 = vmatprep.subr.mxu0 0.0
    %459 = vmatpush1.msra.mxu0 0.0
    %460 = vmatprep.subr.mxu0 0.0
    %461 = vmatpush1.msra.mxu0 0.0
    %462 = vmatprep.subr.mxu0 0.0
    %463 = vmatpush1.msra.mxu0 0.0
    %464 = vmatprep.subr.mxu0 0.0
    %465 = vmatpush1.msra.mxu0 0.0
    %466 = vmatprep.subr.mxu0 0.0
    %467 = vmatpush1.msra.mxu0 0.0
    %468 = vmatprep.subr.mxu0 0.0
    %469 = vmatpush1.msra.mxu0 0.0
    %470 = vmatprep.mubr.f32.mxu0 0.0
    %471 = vmatmul.mubr.f32.gmra.mrb[0].mxu0 %v380
    %v472 = vpop.f32.mrb[0].mxu0
    %v473 = vadd.f32 %v404, %v472
    %v474 = vpop.f32.mrb[0].mxu0
    %475 = vdwg.mxu0
    %vm476 = vcmp.gt.f32.partialorder %v473, 0.0
    %v477 = vmul.f32 %v473, 0.01
    %v478 = vsel %vm476, %v473, %v477
    %v479 = vld [vmem:[#allocation10] sm:$0xff]
    %v480 = vld [vmem:[#allocation10 + $0x8] sm:$0xff]
    %v481 = vld [vmem:[#allocation10 + $0x10] sm:$0xff]
    %v482 = vld [vmem:[#allocation10 + $0x18] sm:$0xff]
    %v483 = vld [vmem:[#allocation10 + $0x20] sm:$0xff]
    %v484 = vld [vmem:[#allocation10 + $0x28] sm:$0xff]
    %v485 = vld [vmem:[#allocation10 + $0x30] sm:$0xff]
    %v486 = vld [vmem:[#allocation10 + $0x38] sm:$0xff]
    %v487 = vld [vmem:[#allocation10 + $0x40] sm:$0xff]
    %v488 = vld [vmem:[#allocation10 + $0x48] sm:$0xff]
    %v489 = vld [vmem:[#allocation10 + $0x50] sm:$0xff]
    %v490 = vld [vmem:[#allocation10 + $0x58] sm:$0xff]
    %v491 = vld [vmem:[#allocation10 + $0x60] sm:$0xff]
    %v492 = vld [vmem:[#allocation10 + $0x68] sm:$0xff]
    %v493 = vld [vmem:[#allocation10 + $0x70] sm:$0xff]
    %v494 = vld [vmem:[#allocation10 + $0x78] sm:$0xff]
    %v495 = vld [vmem:[%s8] sm:$0x1]
    %v497 = vlaneseq
    %v498 = vshrl.u32 %v497, 7
    %v499 = vsub.s32 0, %v498
    %v500 = vrot.slane %v495, %v499
    %502 = vmatprep.subr.mxu0 0.0
    %503 = vmatpush1.msra.mxu0 %v479
    %504 = vmatprep.subr.mxu0 0.0
    %505 = vmatpush1.msra.mxu0 %v480
    %506 = vmatprep.subr.mxu0 0.0
    %507 = vmatpush1.msra.mxu0 %v481
    %508 = vmatprep.subr.mxu0 0.0
    %509 = vmatpush1.msra.mxu0 %v482
    %510 = vmatprep.subr.mxu0 0.0
    %511 = vmatpush1.msra.mxu0 %v483
    %512 = vmatprep.subr.mxu0 0.0
    %513 = vmatpush1.msra.mxu0 %v484
    %514 = vmatprep.subr.mxu0 0.0
    %515 = vmatpush1.msra.mxu0 %v485
    %516 = vmatprep.subr.mxu0 0.0
    %517 = vmatpush1.msra.mxu0 %v486
    %518 = vmatprep.subr.mxu0 0.0
    %519 = vmatpush1.msra.mxu0 %v487
    %520 = vmatprep.subr.mxu0 0.0
    %521 = vmatpush1.msra.mxu0 %v488
    %522 = vmatprep.subr.mxu0 0.0
    %523 = vmatpush1.msra.mxu0 %v489
    %524 = vmatprep.subr.mxu0 0.0
    %525 = vmatpush1.msra.mxu0 %v490
    %526 = vmatprep.subr.mxu0 0.0
    %527 = vmatpush1.msra.mxu0 %v491
    %528 = vmatprep.subr.mxu0 0.0
    %529 = vmatpush1.msra.mxu0 %v492
    %530 = vmatprep.subr.mxu0 0.0
    %531 = vmatpush1.msra.mxu0 %v493
    %532 = vmatprep.subr.mxu0 0.0
    %533 = vmatpush1.msra.mxu0 %v494
    %534 = vmatprep.subr.mxu0 0.0
    %535 = vmatpush1.msra.mxu0 0.0
    %536 = vmatprep.subr.mxu0 0.0
    %537 = vmatpush1.msra.mxu0 0.0
    %538 = vmatprep.subr.mxu0 0.0
    %539 = vmatpush1.msra.mxu0 0.0
    %540 = vmatprep.subr.mxu0 0.0
    %541 = vmatpush1.msra.mxu0 0.0
    %542 = vmatprep.subr.mxu0 0.0
    %543 = vmatpush1.msra.mxu0 0.0
    %544 = vmatprep.subr.mxu0 0.0
    %545 = vmatpush1.msra.mxu0 0.0
    %546 = vmatprep.subr.mxu0 0.0
    %547 = vmatpush1.msra.mxu0 0.0
    %548 = vmatprep.subr.mxu0 0.0
    %549 = vmatpush1.msra.mxu0 0.0
    %550 = vmatprep.subr.mxu0 0.0
    %551 = vmatpush1.msra.mxu0 0.0
    %552 = vmatprep.subr.mxu0 0.0
    %553 = vmatpush1.msra.mxu0 0.0
    %554 = vmatprep.subr.mxu0 0.0
    %555 = vmatpush1.msra.mxu0 0.0
    %556 = vmatprep.subr.mxu0 0.0
    %557 = vmatpush1.msra.mxu0 0.0
    %558 = vmatprep.subr.mxu0 0.0
    %559 = vmatpush1.msra.mxu0 0.0
    %560 = vmatprep.subr.mxu0 0.0
    %561 = vmatpush1.msra.mxu0 0.0
    %562 = vmatprep.subr.mxu0 0.0
    %563 = vmatpush1.msra.mxu0 0.0
    %564 = vmatprep.subr.mxu0 0.0
    %565 = vmatpush1.msra.mxu0 0.0
    %566 = vmatprep.mubr.f32.mxu0 0.0
    %567 = vmatmul.mubr.f32.gmra.mrb[0].mxu0 %v478
    %v568 = vpop.f32.mrb[0].mxu0
    %v569 = vadd.f32 %v500, %v568
    %v570 = vpop.f32.mrb[0].mxu0
    %571 = vdwg.mxu0
    %v572 = vtanh.pop %v569
    %v573 = vld [vmem:[#allocation11] sm:$0xff]
    %v574 = vld [vmem:[#allocation11 + $0x8] sm:$0xff]
    %v575 = vld [vmem:[#allocation11 + $0x10] sm:$0xff]
    %v576 = vld [vmem:[#allocation11 + $0x18] sm:$0xff]
    %v577 = vld [vmem:[#allocation11 + $0x20] sm:$0xff]
    %v578 = vld [vmem:[#allocation11 + $0x28] sm:$0xff]
    %v579 = vld [vmem:[#allocation11 + $0x30] sm:$0xff]
    %v580 = vld [vmem:[#allocation11 + $0x38] sm:$0xff]
    %v581 = vld [vmem:[#allocation11 + $0x40] sm:$0xff]
    %v582 = vld [vmem:[#allocation11 + $0x48] sm:$0xff]
    %v583 = vld [vmem:[#allocation11 + $0x50] sm:$0xff]
    %v584 = vld [vmem:[#allocation11 + $0x58] sm:$0xff]
    %v585 = vld [vmem:[#allocation11 + $0x60] sm:$0xff]
    %v586 = vld [vmem:[#allocation11 + $0x68] sm:$0xff]
    %v587 = vld [vmem:[#allocation11 + $0x70] sm:$0xff]
    %v588 = vld [vmem:[#allocation11 + $0x78] sm:$0xff]
    %v589 = vld [vmem:[%s10] sm:$0x1]
    %v591 = vlaneseq
    %v592 = vshrl.u32 %v591, 7
    %v593 = vsub.s32 0, %v592
    %v594 = vrot.slane %v589, %v593
    %596 = vmatprep.subr.mxu0 0.0
    %597 = vmatpush1.msra.mxu0 %v573
    %598 = vmatprep.subr.mxu0 0.0
    %599 = vmatpush1.msra.mxu0 %v574
    %600 = vmatprep.subr.mxu0 0.0
    %601 = vmatpush1.msra.mxu0 %v575
    %602 = vmatprep.subr.mxu0 0.0
    %603 = vmatpush1.msra.mxu0 %v576
    %604 = vmatprep.subr.mxu0 0.0
    %605 = vmatpush1.msra.mxu0 %v577
    %606 = vmatprep.subr.mxu0 0.0
    %607 = vmatpush1.msra.mxu0 %v578
    %608 = vmatprep.subr.mxu0 0.0
    %609 = vmatpush1.msra.mxu0 %v579
    %610 = vmatprep.subr.mxu0 0.0
    %611 = vmatpush1.msra.mxu0 %v580
    %612 = vmatprep.subr.mxu0 0.0
    %613 = vmatpush1.msra.mxu0 %v581
    %614 = vmatprep.subr.mxu0 0.0
    %615 = vmatpush1.msra.mxu0 %v582
    %616 = vmatprep.subr.mxu0 0.0
    %617 = vmatpush1.msra.mxu0 %v583
    %618 = vmatprep.subr.mxu0 0.0
    %619 = vmatpush1.msra.mxu0 %v584
    %620 = vmatprep.subr.mxu0 0.0
    %621 = vmatpush1.msra.mxu0 %v585
    %622 = vmatprep.subr.mxu0 0.0
    %623 = vmatpush1.msra.mxu0 %v586
    %624 = vmatprep.subr.mxu0 0.0
    %625 = vmatpush1.msra.mxu0 %v587
    %626 = vmatprep.subr.mxu0 0.0
    %627 = vmatpush1.msra.mxu0 %v588
    %628 = vmatprep.subr.mxu0 0.0
    %629 = vmatpush1.msra.mxu0 0.0
    %630 = vmatprep.subr.mxu0 0.0
    %631 = vmatpush1.msra.mxu0 0.0
    %632 = vmatprep.subr.mxu0 0.0
    %633 = vmatpush1.msra.mxu0 0.0
    %634 = vmatprep.subr.mxu0 0.0
    %635 = vmatpush1.msra.mxu0 0.0
    %636 = vmatprep.subr.mxu0 0.0
    %637 = vmatpush1.msra.mxu0 0.0
    %638 = vmatprep.subr.mxu0 0.0
    %639 = vmatpush1.msra.mxu0 0.0
    %640 = vmatprep.subr.mxu0 0.0
    %641 = vmatpush1.msra.mxu0 0.0
    %642 = vmatprep.subr.mxu0 0.0
    %643 = vmatpush1.msra.mxu0 0.0
    %644 = vmatprep.subr.mxu0 0.0
    %645 = vmatpush1.msra.mxu0 0.0
    %646 = vmatprep.subr.mxu0 0.0
    %647 = vmatpush1.msra.mxu0 0.0
    %648 = vmatprep.subr.mxu0 0.0
    %649 = vmatpush1.msra.mxu0 0.0
    %650 = vmatprep.subr.mxu0 0.0
    %651 = vmatpush1.msra.mxu0 0.0
    %652 = vmatprep.subr.mxu0 0.0
    %653 = vmatpush1.msra.mxu0 0.0
    %654 = vmatprep.subr.mxu0 0.0
    %655 = vmatpush1.msra.mxu0 0.0
    %656 = vmatprep.subr.mxu0 0.0
    %657 = vmatpush1.msra.mxu0 0.0
    %658 = vmatprep.subr.mxu0 0.0
    %659 = vmatpush1.msra.mxu0 0.0
    %660 = vmatprep.mubr.f32.mxu0 0.0
    %661 = vmatmul.mubr.f32.gmra.mrb[0].mxu0 %v478
    %v662 = vpop.f32.mrb[0].mxu0
    %v663 = vadd.f32 %v594, %v662
    %v664 = vpop.f32.mrb[0].mxu0
    %665 = vdwg.mxu0
    %v666 = vmul.f32 %v572, 1.442695
    %v667 = vpow.pop %v666
    %v668 = vmul.f32 %v188, %v667
    %v669 = vadd.f32 %v668, %v663
    %s670 = scalar_lea.vmem [#allocation7], 128
    %v671 = vld [vmem:[%s670] sm:$0xff]
    %v672 = vld [vmem:[%s670 + $0x8] sm:$0xff]
    %v673 = vld [vmem:[%s670 + $0x10] sm:$0xff]
    %v674 = vld [vmem:[%s670 + $0x18] sm:$0xff]
    %v675 = vld [vmem:[%s670 + $0x20] sm:$0xff]
    %v676 = vld [vmem:[%s670 + $0x28] sm:$0xff]
    %v677 = vld [vmem:[%s670 + $0x30] sm:$0xff]
    %v678 = vld [vmem:[%s670 + $0x38] sm:$0xff]
    %v679 = vld [vmem:[%s670 + $0x40] sm:$0xff]
    %v680 = vld [vmem:[%s670 + $0x48] sm:$0xff]
    %v681 = vld [vmem:[%s670 + $0x50] sm:$0xff]
    %v682 = vld [vmem:[%s670 + $0x58] sm:$0xff]
    %v683 = vld [vmem:[%s670 + $0x60] sm:$0xff]
    %v684 = vld [vmem:[%s670 + $0x68] sm:$0xff]
    %v685 = vld [vmem:[%s670 + $0x70] sm:$0xff]
    %v686 = vld [vmem:[%s670 + $0x78] sm:$0xff]
    %s687 = scalar_lea.vmem %s4, 1
    %v688 = vld [vmem:[%s687] sm:$0x1]
    %v690 = vlaneseq
    %v691 = vshrl.u32 %v690, 7
    %v692 = vsub.s32 0, %v691
    %v693 = vrot.slane %v688, %v692
    %695 = vmatprep.subr.mxu0 0.0
    %696 = vmatpush1.msra.mxu0 %v671
    %697 = vmatprep.subr.mxu0 0.0
    %698 = vmatpush1.msra.mxu0 %v672
    %699 = vmatprep.subr.mxu0 0.0
    %700 = vmatpush1.msra.mxu0 %v673
    %701 = vmatprep.subr.mxu0 0.0
    %702 = vmatpush1.msra.mxu0 %v674
    %703 = vmatprep.subr.mxu0 0.0
    %704 = vmatpush1.msra.mxu0 %v675
    %705 = vmatprep.subr.mxu0 0.0
    %706 = vmatpush1.msra.mxu0 %v676
    %707 = vmatprep.subr.mxu0 0.0
    %708 = vmatpush1.msra.mxu0 %v677
    %709 = vmatprep.subr.mxu0 0.0
    %710 = vmatpush1.msra.mxu0 %v678
    %711 = vmatprep.subr.mxu0 0.0
    %712 = vmatpush1.msra.mxu0 %v679
    %713 = vmatprep.subr.mxu0 0.0
    %714 = vmatpush1.msra.mxu0 %v680
    %715 = vmatprep.subr.mxu0 0.0
    %716 = vmatpush1.msra.mxu0 %v681
    %717 = vmatprep.subr.mxu0 0.0
    %718 = vmatpush1.msra.mxu0 %v682
    %719 = vmatprep.subr.mxu0 0.0
    %720 = vmatpush1.msra.mxu0 %v683
    %721 = vmatprep.subr.mxu0 0.0
    %722 = vmatpush1.msra.mxu0 %v684
    %723 = vmatprep.subr.mxu0 0.0
    %724 = vmatpush1.msra.mxu0 %v685
    %725 = vmatprep.subr.mxu0 0.0
    %726 = vmatpush1.msra.mxu0 %v686
    %727 = vmatprep.subr.mxu0 0.0
    %728 = vmatpush1.msra.mxu0 0.0
    %729 = vmatprep.subr.mxu0 0.0
    %730 = vmatpush1.msra.mxu0 0.0
    %731 = vmatprep.subr.mxu0 0.0
    %732 = vmatpush1.msra.mxu0 0.0
    %733 = vmatprep.subr.mxu0 0.0
    %734 = vmatpush1.msra.mxu0 0.0
    %735 = vmatprep.subr.mxu0 0.0
    %736 = vmatpush1.msra.mxu0 0.0
    %737 = vmatprep.subr.mxu0 0.0
    %738 = vmatpush1.msra.mxu0 0.0
    %739 = vmatprep.subr.mxu0 0.0
    %740 = vmatpush1.msra.mxu0 0.0
    %741 = vmatprep.subr.mxu0 0.0
    %742 = vmatpush1.msra.mxu0 0.0
    %743 = vmatprep.subr.mxu0 0.0
    %744 = vmatpush1.msra.mxu0 0.0
    %745 = vmatprep.subr.mxu0 0.0
    %746 = vmatpush1.msra.mxu0 0.0
    %747 = vmatprep.subr.mxu0 0.0
    %748 = vmatpush1.msra.mxu0 0.0
    %749 = vmatprep.subr.mxu0 0.0
    %750 = vmatpush1.msra.mxu0 0.0
    %751 = vmatprep.subr.mxu0 0.0
    %752 = vmatpush1.msra.mxu0 0.0
    %753 = vmatprep.subr.mxu0 0.0
    %754 = vmatpush1.msra.mxu0 0.0
    %755 = vmatprep.subr.mxu0 0.0
    %756 = vmatpush1.msra.mxu0 0.0
    %757 = vmatprep.subr.mxu0 0.0
    %758 = vmatpush1.msra.mxu0 0.0
    %759 = vmatprep.mubr.f32.mxu0 0.0
    %760 = vmatmul.mubr.f32.gmra.mrb[0].mxu0 %v669
    %v761 = vpop.f32.mrb[0].mxu0
    %v762 = vadd.f32 %v693, %v761
    %v763 = vpop.f32.mrb[0].mxu0
    %764 = vdwg.mxu0
    %vm765 = vcmp.gt.f32.partialorder %v762, 0.0
    %v766 = vmul.f32 %v762, 0.01
    %v767 = vsel %vm765, %v762, %v766
    %s768 = scalar_lea.vmem [#allocation8], 256
    %v769 = vld [vmem:[%s768] sm:$0xff]
    %v770 = vld [vmem:[%s768 + $0x8] sm:$0xff]
    %v771 = vld [vmem:[%s768 + $0x10] sm:$0xff]
    %v772 = vld [vmem:[%s768 + $0x18] sm:$0xff]
    %v773 = vld [vmem:[%s768 + $0x20] sm:$0xff]
    %v774 = vld [vmem:[%s768 + $0x28] sm:$0xff]
    %v775 = vld [vmem:[%s768 + $0x30] sm:$0xff]
    %v776 = vld [vmem:[%s768 + $0x38] sm:$0xff]
    %v777 = vld [vmem:[%s768 + $0x40] sm:$0xff]
    %v778 = vld [vmem:[%s768 + $0x48] sm:$0xff]
    %v779 = vld [vmem:[%s768 + $0x50] sm:$0xff]
    %v780 = vld [vmem:[%s768 + $0x58] sm:$0xff]
    %v781 = vld [vmem:[%s768 + $0x60] sm:$0xff]
    %v782 = vld [vmem:[%s768 + $0x68] sm:$0xff]
    %v783 = vld [vmem:[%s768 + $0x70] sm:$0xff]
    %v784 = vld [vmem:[%s768 + $0x78] sm:$0xff]
    %s785 = scalar_lea.vmem %s6, 2
    %v786 = vld [vmem:[%s785] sm:$0x1]
    %v788 = vlaneseq
    %v789 = vshrl.u32 %v788, 7
    %v790 = vsub.s32 0, %v789
    %v791 = vrot.slane %v786, %v790
    %793 = vmatprep.subr.mxu0 0.0
    %794 = vmatpush1.msra.mxu0 %v769
    %795 = vmatprep.subr.mxu0 0.0
    %796 = vmatpush1.msra.mxu0 %v770
    %797 = vmatprep.subr.mxu0 0.0
    %798 = vmatpush1.msra.mxu0 %v771
    %799 = vmatprep.subr.mxu0 0.0
    %800 = vmatpush1.msra.mxu0 %v772
    %801 = vmatprep.subr.mxu0 0.0
    %802 = vmatpush1.msra.mxu0 %v773
    %803 = vmatprep.subr.mxu0 0.0
    %804 = vmatpush1.msra.mxu0 %v774
    %805 = vmatprep.subr.mxu0 0.0
    %806 = vmatpush1.msra.mxu0 %v775
    %807 = vmatprep.subr.mxu0 0.0
    %808 = vmatpush1.msra.mxu0 %v776
    %809 = vmatprep.subr.mxu0 0.0
    %810 = vmatpush1.msra.mxu0 %v777
    %811 = vmatprep.subr.mxu0 0.0
    %812 = vmatpush1.msra.mxu0 %v778
    %813 = vmatprep.subr.mxu0 0.0
    %814 = vmatpush1.msra.mxu0 %v779
    %815 = vmatprep.subr.mxu0 0.0
    %816 = vmatpush1.msra.mxu0 %v780
    %817 = vmatprep.subr.mxu0 0.0
    %818 = vmatpush1.msra.mxu0 %v781
    %819 = vmatprep.subr.mxu0 0.0
    %820 = vmatpush1.msra.mxu0 %v782
    %821 = vmatprep.subr.mxu0 0.0
    %822 = vmatpush1.msra.mxu0 %v783
    %823 = vmatprep.subr.mxu0 0.0
    %824 = vmatpush1.msra.mxu0 %v784
    %825 = vmatprep.subr.mxu0 0.0
    %826 = vmatpush1.msra.mxu0 0.0
    %827 = vmatprep.subr.mxu0 0.0
    %828 = vmatpush1.msra.mxu0 0.0
    %829 = vmatprep.subr.mxu0 0.0
    %830 = vmatpush1.msra.mxu0 0.0
    %831 = vmatprep.subr.mxu0 0.0
    %832 = vmatpush1.msra.mxu0 0.0
    %833 = vmatprep.subr.mxu0 0.0
    %834 = vmatpush1.msra.mxu0 0.0
    %835 = vmatprep.subr.mxu0 0.0
    %836 = vmatpush1.msra.mxu0 0.0
    %837 = vmatprep.subr.mxu0 0.0
    %838 = vmatpush1.msra.mxu0 0.0
    %839 = vmatprep.subr.mxu0 0.0
    %840 = vmatpush1.msra.mxu0 0.0
    %841 = vmatprep.subr.mxu0 0.0
    %842 = vmatpush1.msra.mxu0 0.0
    %843 = vmatprep.subr.mxu0 0.0
    %844 = vmatpush1.msra.mxu0 0.0
    %845 = vmatprep.subr.mxu0 0.0
    %846 = vmatpush1.msra.mxu0 0.0
    %847 = vmatprep.subr.mxu0 0.0
    %848 = vmatpush1.msra.mxu0 0.0
    %849 = vmatprep.subr.mxu0 0.0
    %850 = vmatpush1.msra.mxu0 0.0
    %851 = vmatprep.subr.mxu0 0.0
    %852 = vmatpush1.msra.mxu0 0.0
    %853 = vmatprep.subr.mxu0 0.0
    %854 = vmatpush1.msra.mxu0 0.0
    %855 = vmatprep.subr.mxu0 0.0
    %856 = vmatpush1.msra.mxu0 0.0
    %857 = vmatprep.mubr.f32.mxu0 0.0
    %858 = vmatmul.mubr.f32.gmra.mrb[0].mxu0 %v767
    %v859 = vpop.f32.mrb[0].mxu0
    %v860 = vadd.f32 %v791, %v859
    %v861 = vpop.f32.mrb[0].mxu0
    %862 = vdwg.mxu0
    %vm863 = vcmp.gt.f32.partialorder %v860, 0.0
    %v864 = vmul.f32 %v860, 0.01
    %v865 = vsel %vm863, %v860, %v864
    %s866 = scalar_lea.vmem [#allocation8], 384
    %v867 = vld [vmem:[%s866] sm:$0xff]
    %v868 = vld [vmem:[%s866 + $0x8] sm:$0xff]
    %v869 = vld [vmem:[%s866 + $0x10] sm:$0xff]
    %v870 = vld [vmem:[%s866 + $0x18] sm:$0xff]
    %v871 = vld [vmem:[%s866 + $0x20] sm:$0xff]
    %v872 = vld [vmem:[%s866 + $0x28] sm:$0xff]
    %v873 = vld [vmem:[%s866 + $0x30] sm:$0xff]
    %v874 = vld [vmem:[%s866 + $0x38] sm:$0xff]
    %v875 = vld [vmem:[%s866 + $0x40] sm:$0xff]
    %v876 = vld [vmem:[%s866 + $0x48] sm:$0xff]
    %v877 = vld [vmem:[%s866 + $0x50] sm:$0xff]
    %v878 = vld [vmem:[%s866 + $0x58] sm:$0xff]
    %v879 = vld [vmem:[%s866 + $0x60] sm:$0xff]
    %v880 = vld [vmem:[%s866 + $0x68] sm:$0xff]
    %v881 = vld [vmem:[%s866 + $0x70] sm:$0xff]
    %v882 = vld [vmem:[%s866 + $0x78] sm:$0xff]
    %s883 = scalar_lea.vmem %s6, 3
    %v884 = vld [vmem:[%s883] sm:$0x1]
    %v886 = vlaneseq
    %v887 = vshrl.u32 %v886, 7
    %v888 = vsub.s32 0, %v887
    %v889 = vrot.slane %v884, %v888
    %891 = vmatprep.subr.mxu0 0.0
    %892 = vmatpush1.msra.mxu0 %v867
    %893 = vmatprep.subr.mxu0 0.0
    %894 = vmatpush1.msra.mxu0 %v868
    %895 = vmatprep.subr.mxu0 0.0
    %896 = vmatpush1.msra.mxu0 %v869
    %897 = vmatprep.subr.mxu0 0.0
    %898 = vmatpush1.msra.mxu0 %v870
    %899 = vmatprep.subr.mxu0 0.0
    %900 = vmatpush1.msra.mxu0 %v871
    %901 = vmatprep.subr.mxu0 0.0
    %902 = vmatpush1.msra.mxu0 %v872
    %903 = vmatprep.subr.mxu0 0.0
    %904 = vmatpush1.msra.mxu0 %v873
    %905 = vmatprep.subr.mxu0 0.0
    %906 = vmatpush1.msra.mxu0 %v874
    %907 = vmatprep.subr.mxu0 0.0
    %908 = vmatpush1.msra.mxu0 %v875
    %909 = vmatprep.subr.mxu0 0.0
    %910 = vmatpush1.msra.mxu0 %v876
    %911 = vmatprep.subr.mxu0 0.0
    %912 = vmatpush1.msra.mxu0 %v877
    %913 = vmatprep.subr.mxu0 0.0
    %914 = vmatpush1.msra.mxu0 %v878
    %915 = vmatprep.subr.mxu0 0.0
    %916 = vmatpush1.msra.mxu0 %v879
    %917 = vmatprep.subr.mxu0 0.0
    %918 = vmatpush1.msra.mxu0 %v880
    %919 = vmatprep.subr.mxu0 0.0
    %920 = vmatpush1.msra.mxu0 %v881
    %921 = vmatprep.subr.mxu0 0.0
    %922 = vmatpush1.msra.mxu0 %v882
    %923 = vmatprep.subr.mxu0 0.0
    %924 = vmatpush1.msra.mxu0 0.0
    %925 = vmatprep.subr.mxu0 0.0
    %926 = vmatpush1.msra.mxu0 0.0
    %927 = vmatprep.subr.mxu0 0.0
    %928 = vmatpush1.msra.mxu0 0.0
    %929 = vmatprep.subr.mxu0 0.0
    %930 = vmatpush1.msra.mxu0 0.0
    %931 = vmatprep.subr.mxu0 0.0
    %932 = vmatpush1.msra.mxu0 0.0
    %933 = vmatprep.subr.mxu0 0.0
    %934 = vmatpush1.msra.mxu0 0.0
    %935 = vmatprep.subr.mxu0 0.0
    %936 = vmatpush1.msra.mxu0 0.0
    %937 = vmatprep.subr.mxu0 0.0
    %938 = vmatpush1.msra.mxu0 0.0
    %939 = vmatprep.subr.mxu0 0.0
    %940 = vmatpush1.msra.mxu0 0.0
    %941 = vmatprep.subr.mxu0 0.0
    %942 = vmatpush1.msra.mxu0 0.0
    %943 = vmatprep.subr.mxu0 0.0
    %944 = vmatpush1.msra.mxu0 0.0
    %945 = vmatprep.subr.mxu0 0.0
    %946 = vmatpush1.msra.mxu0 0.0
    %947 = vmatprep.subr.mxu0 0.0
    %948 = vmatpush1.msra.mxu0 0.0
    %949 = vmatprep.subr.mxu0 0.0
    %950 = vmatpush1.msra.mxu0 0.0
    %951 = vmatprep.subr.mxu0 0.0
    %952 = vmatpush1.msra.mxu0 0.0
    %953 = vmatprep.subr.mxu0 0.0
    %954 = vmatpush1.msra.mxu0 0.0
    %955 = vmatprep.mubr.f32.mxu0 0.0
    %956 = vmatmul.mubr.f32.gmra.mrb[0].mxu0 %v865
    %v957 = vpop.f32.mrb[0].mxu0
    %v958 = vadd.f32 %v889, %v957
    %v959 = vpop.f32.mrb[0].mxu0
    %960 = vdwg.mxu0
    %vm961 = vcmp.gt.f32.partialorder %v958, 0.0
    %v962 = vmul.f32 %v958, 0.01
    %v963 = vsel %vm961, %v958, %v962
    %s964 = scalar_lea.vmem [#allocation10], 128
    %v965 = vld [vmem:[%s964] sm:$0xff]
    %v966 = vld [vmem:[%s964 + $0x8] sm:$0xff]
    %v967 = vld [vmem:[%s964 + $0x10] sm:$0xff]
    %v968 = vld [vmem:[%s964 + $0x18] sm:$0xff]
    %v969 = vld [vmem:[%s964 + $0x20] sm:$0xff]
    %v970 = vld [vmem:[%s964 + $0x28] sm:$0xff]
    %v971 = vld [vmem:[%s964 + $0x30] sm:$0xff]
    %v972 = vld [vmem:[%s964 + $0x38] sm:$0xff]
    %v973 = vld [vmem:[%s964 + $0x40] sm:$0xff]
    %v974 = vld [vmem:[%s964 + $0x48] sm:$0xff]
    %v975 = vld [vmem:[%s964 + $0x50] sm:$0xff]
    %v976 = vld [vmem:[%s964 + $0x58] sm:$0xff]
    %v977 = vld [vmem:[%s964 + $0x60] sm:$0xff]
    %v978 = vld [vmem:[%s964 + $0x68] sm:$0xff]
    %v979 = vld [vmem:[%s964 + $0x70] sm:$0xff]
    %v980 = vld [vmem:[%s964 + $0x78] sm:$0xff]
    %s981 = scalar_lea.vmem %s8, 1
    %v982 = vld [vmem:[%s981] sm:$0x1]
    %v984 = vlaneseq
    %v985 = vshrl.u32 %v984, 7
    %v986 = vsub.s32 0, %v985
    %v987 = vrot.slane %v982, %v986
    %989 = vmatprep.subr.mxu0 0.0
    %990 = vmatpush1.msra.mxu0 %v965
    %991 = vmatprep.subr.mxu0 0.0
    %992 = vmatpush1.msra.mxu0 %v966
    %993 = vmatprep.subr.mxu0 0.0
    %994 = vmatpush1.msra.mxu0 %v967
    %995 = vmatprep.subr.mxu0 0.0
    %996 = vmatpush1.msra.mxu0 %v968
    %997 = vmatprep.subr.mxu0 0.0
    %998 = vmatpush1.msra.mxu0 %v969
    %999 = vmatprep.subr.mxu0 0.0
    %1000 = vmatpush1.msra.mxu0 %v970
    %1001 = vmatprep.subr.mxu0 0.0
    %1002 = vmatpush1.msra.mxu0 %v971
    %1003 = vmatprep.subr.mxu0 0.0
    %1004 = vmatpush1.msra.mxu0 %v972
    %1005 = vmatprep.subr.mxu0 0.0
    %1006 = vmatpush1.msra.mxu0 %v973
    %1007 = vmatprep.subr.mxu0 0.0
    %1008 = vmatpush1.msra.mxu0 %v974
    %1009 = vmatprep.subr.mxu0 0.0
    %1010 = vmatpush1.msra.mxu0 %v975
    %1011 = vmatprep.subr.mxu0 0.0
    %1012 = vmatpush1.msra.mxu0 %v976
    %1013 = vmatprep.subr.mxu0 0.0
    %1014 = vmatpush1.msra.mxu0 %v977
    %1015 = vmatprep.subr.mxu0 0.0
    %1016 = vmatpush1.msra.mxu0 %v978
    %1017 = vmatprep.subr.mxu0 0.0
    %1018 = vmatpush1.msra.mxu0 %v979
    %1019 = vmatprep.subr.mxu0 0.0
    %1020 = vmatpush1.msra.mxu0 %v980
    %1021 = vmatprep.subr.mxu0 0.0
    %1022 = vmatpush1.msra.mxu0 0.0
    %1023 = vmatprep.subr.mxu0 0.0
    %1024 = vmatpush1.msra.mxu0 0.0
    %1025 = vmatprep.subr.mxu0 0.0
    %1026 = vmatpush1.msra.mxu0 0.0
    %1027 = vmatprep.subr.mxu0 0.0
    %1028 = vmatpush1.msra.mxu0 0.0
    %1029 = vmatprep.subr.mxu0 0.0
    %1030 = vmatpush1.msra.mxu0 0.0
    %1031 = vmatprep.subr.mxu0 0.0
    %1032 = vmatpush1.msra.mxu0 0.0
    %1033 = vmatprep.subr.mxu0 0.0
    %1034 = vmatpush1.msra.mxu0 0.0
    %1035 = vmatprep.subr.mxu0 0.0
    %1036 = vmatpush1.msra.mxu0 0.0
    %1037 = vmatprep.subr.mxu0 0.0
    %1038 = vmatpush1.msra.mxu0 0.0
    %1039 = vmatprep.subr.mxu0 0.0
    %1040 = vmatpush1.msra.mxu0 0.0
    %1041 = vmatprep.subr.mxu0 0.0
    %1042 = vmatpush1.msra.mxu0 0.0
    %1043 = vmatprep.subr.mxu0 0.0
    %1044 = vmatpush1.msra.mxu0 0.0
    %1045 = vmatprep.subr.mxu0 0.0
    %1046 = vmatpush1.msra.mxu0 0.0
    %1047 = vmatprep.subr.mxu0 0.0
    %1048 = vmatpush1.msra.mxu0 0.0
    %1049 = vmatprep.subr.mxu0 0.0
    %1050 = vmatpush1.msra.mxu0 0.0
    %1051 = vmatprep.subr.mxu0 0.0
    %1052 = vmatpush1.msra.mxu0 0.0
    %1053 = vmatprep.mubr.f32.mxu0 0.0
    %1054 = vmatmul.mubr.f32.gmra.mrb[0].mxu0 %v963
    %v1055 = vpop.f32.mrb[0].mxu0
    %v1056 = vadd.f32 %v987, %v1055
    %v1057 = vpop.f32.mrb[0].mxu0
    %1058 = vdwg.mxu0
    %v1059 = vtanh.pop %v1056
    %s1060 = scalar_lea.vmem [#allocation11], 128
    %v1061 = vld [vmem:[%s1060] sm:$0xff]
    %v1062 = vld [vmem:[%s1060 + $0x8] sm:$0xff]
    %v1063 = vld [vmem:[%s1060 + $0x10] sm:$0xff]
    %v1064 = vld [vmem:[%s1060 + $0x18] sm:$0xff]
    %v1065 = vld [vmem:[%s1060 + $0x20] sm:$0xff]
    %v1066 = vld [vmem:[%s1060 + $0x28] sm:$0xff]
    %v1067 = vld [vmem:[%s1060 + $0x30] sm:$0xff]
    %v1068 = vld [vmem:[%s1060 + $0x38] sm:$0xff]
    %v1069 = vld [vmem:[%s1060 + $0x40] sm:$0xff]
    %v1070 = vld [vmem:[%s1060 + $0x48] sm:$0xff]
    %v1071 = vld [vmem:[%s1060 + $0x50] sm:$0xff]
    %v1072 = vld [vmem:[%s1060 + $0x58] sm:$0xff]
    %v1073 = vld [vmem:[%s1060 + $0x60] sm:$0xff]
    %v1074 = vld [vmem:[%s1060 + $0x68] sm:$0xff]
    %v1075 = vld [vmem:[%s1060 + $0x70] sm:$0xff]
    %v1076 = vld [vmem:[%s1060 + $0x78] sm:$0xff]
    %s1077 = scalar_lea.vmem %s10, 1
    %v1078 = vld [vmem:[%s1077] sm:$0x1]
    %v1080 = vlaneseq
    %v1081 = vshrl.u32 %v1080, 7
    %v1082 = vsub.s32 0, %v1081
    %v1083 = vrot.slane %v1078, %v1082
    %1085 = vmatprep.subr.mxu0 0.0
    %1086 = vmatpush1.msra.mxu0 %v1061
    %1087 = vmatprep.subr.mxu0 0.0
    %1088 = vmatpush1.msra.mxu0 %v1062
    %1089 = vmatprep.subr.mxu0 0.0
    %1090 = vmatpush1.msra.mxu0 %v1063
    %1091 = vmatprep.subr.mxu0 0.0
    %1092 = vmatpush1.msra.mxu0 %v1064
    %1093 = vmatprep.subr.mxu0 0.0
    %1094 = vmatpush1.msra.mxu0 %v1065
    %1095 = vmatprep.subr.mxu0 0.0
    %1096 = vmatpush1.msra.mxu0 %v1066
    %1097 = vmatprep.subr.mxu0 0.0
    %1098 = vmatpush1.msra.mxu0 %v1067
    %1099 = vmatprep.subr.mxu0 0.0
    %1100 = vmatpush1.msra.mxu0 %v1068
    %1101 = vmatprep.subr.mxu0 0.0
    %1102 = vmatpush1.msra.mxu0 %v1069
    %1103 = vmatprep.subr.mxu0 0.0
    %1104 = vmatpush1.msra.mxu0 %v1070
    %1105 = vmatprep.subr.mxu0 0.0
    %1106 = vmatpush1.msra.mxu0 %v1071
    %1107 = vmatprep.subr.mxu0 0.0
    %1108 = vmatpush1.msra.mxu0 %v1072
    %1109 = vmatprep.subr.mxu0 0.0
    %1110 = vmatpush1.msra.mxu0 %v1073
    %1111 = vmatprep.subr.mxu0 0.0
    %1112 = vmatpush1.msra.mxu0 %v1074
    %1113 = vmatprep.subr.mxu0 0.0
    %1114 = vmatpush1.msra.mxu0 %v1075
    %1115 = vmatprep.subr.mxu0 0.0
    %1116 = vmatpush1.msra.mxu0 %v1076
    %1117 = vmatprep.subr.mxu0 0.0
    %1118 = vmatpush1.msra.mxu0 0.0
    %1119 = vmatprep.subr.mxu0 0.0
    %1120 = vmatpush1.msra.mxu0 0.0
    %1121 = vmatprep.subr.mxu0 0.0
    %1122 = vmatpush1.msra.mxu0 0.0
    %1123 = vmatprep.subr.mxu0 0.0
    %1124 = vmatpush1.msra.mxu0 0.0
    %1125 = vmatprep.subr.mxu0 0.0
    %1126 = vmatpush1.msra.mxu0 0.0
    %1127 = vmatprep.subr.mxu0 0.0
    %1128 = vmatpush1.msra.mxu0 0.0
    %1129 = vmatprep.subr.mxu0 0.0
    %1130 = vmatpush1.msra.mxu0 0.0
    %1131 = vmatprep.subr.mxu0 0.0
    %1132 = vmatpush1.msra.mxu0 0.0
    %1133 = vmatprep.subr.mxu0 0.0
    %1134 = vmatpush1.msra.mxu0 0.0
    %1135 = vmatprep.subr.mxu0 0.0
    %1136 = vmatpush1.msra.mxu0 0.0
    %1137 = vmatprep.subr.mxu0 0.0
    %1138 = vmatpush1.msra.mxu0 0.0
    %1139 = vmatprep.subr.mxu0 0.0
    %1140 = vmatpush1.msra.mxu0 0.0
    %1141 = vmatprep.subr.mxu0 0.0
    %1142 = vmatpush1.msra.mxu0 0.0
    %1143 = vmatprep.subr.mxu0 0.0
    %1144 = vmatpush1.msra.mxu0 0.0
    %1145 = vmatprep.subr.mxu0 0.0
    %1146 = vmatpush1.msra.mxu0 0.0
    %1147 = vmatprep.subr.mxu0 0.0
    %1148 = vmatpush1.msra.mxu0 0.0
    %1149 = vmatprep.mubr.f32.mxu0 0.0
    %1150 = vmatmul.mubr.f32.gmra.mrb[0].mxu0 %v963
    %v1151 = vpop.f32.mrb[0].mxu0
    %v1152 = vadd.f32 %v1083, %v1151
    %v1153 = vpop.f32.mrb[0].mxu0
    %1154 = vdwg.mxu0
    %v1155 = vmul.f32 %v1059, 1.442695
    %v1156 = vpow.pop %v1155
    %v1157 = vmul.f32 %v187, %v1156
    %v1158 = vadd.f32 %v1157, %v1152
    %v1159 = vld [vmem:[#allocation13] sm:$0xff]
    %v1160 = vld [vmem:[#allocation13 + $0x8] sm:$0xff]
    %v1161 = vld [vmem:[#allocation13 + $0x10] sm:$0xff]
    %v1162 = vld [vmem:[#allocation13 + $0x18] sm:$0xff]
    %v1163 = vld [vmem:[#allocation13 + $0x20] sm:$0xff]
    %v1164 = vld [vmem:[#allocation13 + $0x28] sm:$0xff]
    %v1165 = vld [vmem:[#allocation13 + $0x30] sm:$0xff]
    %v1166 = vld [vmem:[#allocation13 + $0x38] sm:$0xff]
    %v1167 = vld [vmem:[#allocation13 + $0x40] sm:$0xff]
    %v1168 = vld [vmem:[#allocation13 + $0x48] sm:$0xff]
    %v1169 = vld [vmem:[#allocation13 + $0x50] sm:$0xff]
    %v1170 = vld [vmem:[#allocation13 + $0x58] sm:$0xff]
    %v1171 = vld [vmem:[#allocation13 + $0x60] sm:$0xff]
    %v1172 = vld [vmem:[#allocation13 + $0x68] sm:$0xff]
    %v1173 = vld [vmem:[#allocation13 + $0x70] sm:$0xff]
    %v1174 = vld [vmem:[#allocation13 + $0x78] sm:$0xff]
    %v1175 = vld [vmem:[#allocation14] sm:$0xff]
    %v1176 = vld [vmem:[#allocation14 + $0x8] sm:$0xff]
    %v1177 = vld [vmem:[#allocation14 + $0x10] sm:$0xff]
    %v1178 = vld [vmem:[#allocation14 + $0x18] sm:$0xff]
    %v1179 = vld [vmem:[#allocation14 + $0x20] sm:$0xff]
    %v1180 = vld [vmem:[#allocation14 + $0x28] sm:$0xff]
    %v1181 = vld [vmem:[#allocation14 + $0x30] sm:$0xff]
    %v1182 = vld [vmem:[#allocation14 + $0x38] sm:$0xff]
    %v1183 = vld [vmem:[#allocation14 + $0x40] sm:$0xff]
    %v1184 = vld [vmem:[#allocation14 + $0x48] sm:$0xff]
    %v1185 = vld [vmem:[#allocation14 + $0x50] sm:$0xff]
    %v1186 = vld [vmem:[#allocation14 + $0x58] sm:$0xff]
    %v1187 = vld [vmem:[#allocation14 + $0x60] sm:$0xff]
    %v1188 = vld [vmem:[#allocation14 + $0x68] sm:$0xff]
    %v1189 = vld [vmem:[#allocation14 + $0x70] sm:$0xff]
    %v1190 = vld [vmem:[#allocation14 + $0x78] sm:$0xff]
    %1191 = vmatprep.subr.mxu0 0.0
    %1192 = vmatpush1.msra.mxu0 %v1175
    %1193 = vmatprep.subr.mxu0 0.0
    %1194 = vmatpush1.msra.mxu0 %v1176
    %1195 = vmatprep.subr.mxu0 0.0
    %1196 = vmatpush1.msra.mxu0 %v1177
    %1197 = vmatprep.subr.mxu0 0.0
    %1198 = vmatpush1.msra.mxu0 %v1178
    %1199 = vmatprep.subr.mxu0 0.0
    %1200 = vmatpush1.msra.mxu0 %v1179
    %1201 = vmatprep.subr.mxu0 0.0
    %1202 = vmatpush1.msra.mxu0 %v1180
    %1203 = vmatprep.subr.mxu0 0.0
    %1204 = vmatpush1.msra.mxu0 %v1181
    %1205 = vmatprep.subr.mxu0 0.0
    %1206 = vmatpush1.msra.mxu0 %v1182
    %1207 = vmatprep.subr.mxu0 0.0
    %1208 = vmatpush1.msra.mxu0 %v1183
    %1209 = vmatprep.subr.mxu0 0.0
    %1210 = vmatpush1.msra.mxu0 %v1184
    %1211 = vmatprep.subr.mxu0 0.0
    %1212 = vmatpush1.msra.mxu0 %v1185
    %1213 = vmatprep.subr.mxu0 0.0
    %1214 = vmatpush1.msra.mxu0 %v1186
    %1215 = vmatprep.subr.mxu0 0.0
    %1216 = vmatpush1.msra.mxu0 %v1187
    %1217 = vmatprep.subr.mxu0 0.0
    %1218 = vmatpush1.msra.mxu0 %v1188
    %1219 = vmatprep.subr.mxu0 0.0
    %1220 = vmatpush1.msra.mxu0 %v1189
    %1221 = vmatprep.subr.mxu0 0.0
    %1222 = vmatpush1.msra.mxu0 %v1190
    %1223 = vmatprep.subr.mxu0 0.0
    %1224 = vmatpush1.msra.mxu0 0.0
    %1225 = vmatprep.subr.mxu0 0.0
    %1226 = vmatpush1.msra.mxu0 0.0
    %1227 = vmatprep.subr.mxu0 0.0
    %1228 = vmatpush1.msra.mxu0 0.0
    %1229 = vmatprep.subr.mxu0 0.0
    %1230 = vmatpush1.msra.mxu0 0.0
    %1231 = vmatprep.subr.mxu0 0.0
    %1232 = vmatpush1.msra.mxu0 0.0
    %1233 = vmatprep.subr.mxu0 0.0
    %1234 = vmatpush1.msra.mxu0 0.0
    %1235 = vmatprep.subr.mxu0 0.0
    %1236 = vmatpush1.msra.mxu0 0.0
    %1237 = vmatprep.subr.mxu0 0.0
    %1238 = vmatpush1.msra.mxu0 0.0
    %1239 = vmatprep.subr.mxu0 0.0
    %1240 = vmatpush1.msra.mxu0 0.0
    %1241 = vmatprep.subr.mxu0 0.0
    %1242 = vmatpush1.msra.mxu0 0.0
    %1243 = vmatprep.subr.mxu0 0.0
    %1244 = vmatpush1.msra.mxu0 0.0
    %1245 = vmatprep.subr.mxu0 0.0
    %1246 = vmatpush1.msra.mxu0 0.0
    %1247 = vmatprep.subr.mxu0 0.0
    %1248 = vmatpush1.msra.mxu0 0.0
    %1249 = vmatprep.subr.mxu0 0.0
    %1250 = vmatpush1.msra.mxu0 0.0
    %1251 = vmatprep.subr.mxu0 0.0
    %1252 = vmatpush1.msra.mxu0 0.0
    %1253 = vmatprep.subr.mxu0 0.0
    %1254 = vmatpush1.msra.mxu0 0.0
    %1255 = vmatprep.mubr.f32.mxu0 0.0
    %1256 = vmatmul.mubr.f32.gmra.mrb[0].mxu0 %v1158
    %v1257 = vpop.f32.mrb[0].mxu0
    %v1258 = vadd.f32 0.0, %v1257
    %v1259 = vpop.f32.mrb[0].mxu0
    %1260 = vdwg.mxu0
    %1261 = vmatprep.subr.mxu0 0.0
    %1262 = vmatpush1.msra.mxu0 %v1159
    %1263 = vmatprep.subr.mxu0 0.0
    %1264 = vmatpush1.msra.mxu0 %v1160
    %1265 = vmatprep.subr.mxu0 0.0
    %1266 = vmatpush1.msra.mxu0 %v1161
    %1267 = vmatprep.subr.mxu0 0.0
    %1268 = vmatpush1.msra.mxu0 %v1162
    %1269 = vmatprep.subr.mxu0 0.0
    %1270 = vmatpush1.msra.mxu0 %v1163
    %1271 = vmatprep.subr.mxu0 0.0
    %1272 = vmatpush1.msra.mxu0 %v1164
    %1273 = vmatprep.subr.mxu0 0.0
    %1274 = vmatpush1.msra.mxu0 %v1165
    %1275 = vmatprep.subr.mxu0 0.0
    %1276 = vmatpush1.msra.mxu0 %v1166
    %1277 = vmatprep.subr.mxu0 0.0
    %1278 = vmatpush1.msra.mxu0 %v1167
    %1279 = vmatprep.subr.mxu0 0.0
    %1280 = vmatpush1.msra.mxu0 %v1168
    %1281 = vmatprep.subr.mxu0 0.0
    %1282 = vmatpush1.msra.mxu0 %v1169
    %1283 = vmatprep.subr.mxu0 0.0
    %1284 = vmatpush1.msra.mxu0 %v1170
    %1285 = vmatprep.subr.mxu0 0.0
    %1286 = vmatpush1.msra.mxu0 %v1171
    %1287 = vmatprep.subr.mxu0 0.0
    %1288 = vmatpush1.msra.mxu0 %v1172
    %1289 = vmatprep.subr.mxu0 0.0
    %1290 = vmatpush1.msra.mxu0 %v1173
    %1291 = vmatprep.subr.mxu0 0.0
    %1292 = vmatpush1.msra.mxu0 %v1174
    %1293 = vmatprep.subr.mxu0 0.0
    %1294 = vmatpush1.msra.mxu0 0.0
    %1295 = vmatprep.subr.mxu0 0.0
    %1296 = vmatpush1.msra.mxu0 0.0
    %1297 = vmatprep.subr.mxu0 0.0
    %1298 = vmatpush1.msra.mxu0 0.0
    %1299 = vmatprep.subr.mxu0 0.0
    %1300 = vmatpush1.msra.mxu0 0.0
    %1301 = vmatprep.subr.mxu0 0.0
    %1302 = vmatpush1.msra.mxu0 0.0
    %1303 = vmatprep.subr.mxu0 0.0
    %1304 = vmatpush1.msra.mxu0 0.0
    %1305 = vmatprep.subr.mxu0 0.0
    %1306 = vmatpush1.msra.mxu0 0.0
    %1307 = vmatprep.subr.mxu0 0.0
    %1308 = vmatpush1.msra.mxu0 0.0
    %1309 = vmatprep.subr.mxu0 0.0
    %1310 = vmatpush1.msra.mxu0 0.0
    %1311 = vmatprep.subr.mxu0 0.0
    %1312 = vmatpush1.msra.mxu0 0.0
    %1313 = vmatprep.subr.mxu0 0.0
    %1314 = vmatpush1.msra.mxu0 0.0
    %1315 = vmatprep.subr.mxu0 0.0
    %1316 = vmatpush1.msra.mxu0 0.0
    %1317 = vmatprep.subr.mxu0 0.0
    %1318 = vmatpush1.msra.mxu0 0.0
    %1319 = vmatprep.subr.mxu0 0.0
    %1320 = vmatpush1.msra.mxu0 0.0
    %1321 = vmatprep.subr.mxu0 0.0
    %1322 = vmatpush1.msra.mxu0 0.0
    %1323 = vmatprep.subr.mxu0 0.0
    %1324 = vmatpush1.msra.mxu0 0.0
    %1325 = vmatprep.mubr.f32.mxu0 0.0
    %1326 = vmatmul.mubr.f32.gmra.mrb[0].mxu0 %v669
    %v1327 = vpop.f32.mrb[0].mxu0
    %v1328 = vadd.f32 %v1258, %v1327
    %v1329 = vpop.f32.mrb[0].mxu0
    %1330 = vdwg.mxu0
    %1331 = vst [vmem:[#allocation16] sm:$0xff] %v1328
    %1332 = vadd.xlane.f32.xlu0 %v572
    %v1333 = vpop.xlane.xlu0 %1332
    %1334 = vadd.xlane.f32.xlu0 %v1059
    %v1335 = vpop.xlane.xlu0 %1334
    %v1336 = vadd.f32 %v1333, %v1335
    %v1337 = vadd.f32 %v1336, 0.14780203
    %1338 = vst [vmem:[#allocation17] sm:$0xff] %v1337
    // Predicated region
    $region86: #{tpu_custom_call.1} parent=1 // pred_check
      _
    $region87: #{tpu_custom_call.1} parent=1 // pred_check_branch
      %1340 = sbr.rel (0) target = $region89
    $region88: #{tpu_custom_call.1} parent=1 // pred_region
      %s1342 = ssub.s32 128, 128
      %1343 = vsyncadd [#allocation4], %s1342
      %s1345 = sshll.u32 [#allocation16], 4
      %s1346 = int_to_ptr.vmem [resolvable:$true] %s1345
      %1348 = dma.vmem_to_hbm [thread:$0]  %s1346, 128, %s13, [#allocation4]
    $region89: #{tpu_custom_call.1} parent=1 // pred_fallthru
      _
    // Predicated region
    $region90: #{tpu_custom_call.1} parent=1 // pred_check
      _
    $region91: #{tpu_custom_call.1} parent=1 // pred_check_branch
      %1350 = sbr.rel (0) target = $region93
    $region92: #{tpu_custom_call.1} parent=1 // pred_region
      %s1352 = ssub.s32 128, 128
      %1353 = vsyncadd [#allocation18], %s1352
      %s1355 = sshll.u32 [#allocation17], 4
      %s1356 = int_to_ptr.vmem [resolvable:$true] %s1355
      %1358 = dma.vmem_to_hbm [thread:$0]  %s1356, 128, %s14, [#allocation18]
    $region93: #{tpu_custom_call.1} parent=1 // pred_fallthru
      _
    // Predicated region
    $region94: #{tpu_custom_call.1} parent=1 // pred_check
      _
    $region95: #{tpu_custom_call.1} parent=1 // pred_check_branch
      %1360 = sbr.rel (0) target = $region97
    $region96: #{tpu_custom_call.1} parent=1 // pred_region
      %1361 = dma.done [#allocation4], 128
    $region97: #{tpu_custom_call.1} parent=1 // pred_fallthru
      _
    // Predicated region
    $region98: #{tpu_custom_call.1} parent=1 // pred_check
      _
    $region99: #{tpu_custom_call.1} parent=1 // pred_check_branch
      %1363 = sbr.rel (0) target = $region101
    $region100: #{tpu_custom_call.1} parent=1 // pred_region
      %1364 = dma.done [#allocation18], 128
    $region101: #{tpu_custom_call.1} parent=1 // pred_fallthru
      _
    %1365 = vsyncpa [#allocation3], 1
    %1366 = vsyncpa [#allocation6], 1
    %1367 = vsyncpa [#allocation9], 1
    %1368 = vsyncpa [#allocation12], 1
    %1369 = vsyncpa [#allocation15], 1
    %1370 = vsyncpa [#allocation4], 1
    %1371 = vsyncpa [#allocation18], 1

</llo_original>
